<compile_context>
chip_gen: v6e
topology: v6e:2x2x1
jax: 0.10.0
libtpu: 0.0.40
codegen_flags: <defaults>
</compile_context>

<pallas_src>
import math
from fractions import Fraction

import numpy as np
import jax
import jax.numpy as jnp
from jax.experimental import pallas as pl
from jax.experimental.pallas import tpu as pltpu


def _round_up(x, m):
    return ((x + m - 1) // m) * m


def _cdiv(a, b):
    return -(-a // b)


# ----------------------------------------------------------------------------
# Clebsch-Gordan coefficients (real basis), computed deterministically on host.
# Mirrors e3nn's construction: su(2) CG (Racah formula) + change of basis
# real <-> complex spherical harmonics, then unit-normalized.
# ----------------------------------------------------------------------------
def _su2_cg_coeff(j1, m1, j2, m2, j3, m3):
    if m3 != m1 + m2:
        return 0.0
    vmin = int(max(-j1 + j2 + m3, -j1 + m1, 0))
    vmax = int(min(j2 + j3 + m1, j3 - j1 + j2, j3 + m3))

    def f(n):
        return math.factorial(round(n))

    C = ((2.0 * j3 + 1.0) * Fraction(
        f(j3 + j1 - j2) * f(j3 - j1 + j2) * f(j1 + j2 - j3) * f(j3 + m3) * f(j3 - m3),
        f(j1 + j2 + j3 + 1) * f(j1 - m1) * f(j1 + m1) * f(j2 - m2) * f(j2 + m2))) ** 0.5
    S = 0
    for v in range(vmin, vmax + 1):
        S += (-1) ** int(v + j2 + m2) * Fraction(
            f(j2 + j3 + m1 - v) * f(j1 - m1 + v),
            f(v) * f(j3 - j1 + j2 - v) * f(j3 + m3 - v) * f(v + j1 - j2 - m3))
    return float(C * S)


def _su2_clebsch_gordan(j1, j2, j3):
    mat = np.zeros((2 * j1 + 1, 2 * j2 + 1, 2 * j3 + 1), dtype=np.float64)
    for m1 in range(-j1, j1 + 1):
        for m2 in range(-j2, j2 + 1):
            m3 = m1 + m2
            if abs(m3) <= j3:
                mat[j1 + m1, j2 + m2, j3 + m3] = _su2_cg_coeff(j1, m1, j2, m2, j3, m3)
    return mat


def _change_basis_real_to_complex(l):
    q = np.zeros((2 * l + 1, 2 * l + 1), dtype=np.complex128)
    for m in range(-l, 0):
        q[l + m, l + abs(m)] = 1 / 2 ** 0.5
        q[l + m, l - abs(m)] = -1j / 2 ** 0.5
    q[l, l] = 1
    for m in range(1, l + 1):
        q[l + m, l + abs(m)] = (-1) ** m / 2 ** 0.5
        q[l + m, l - abs(m)] = 1j * (-1) ** m / 2 ** 0.5
    return (-1j) ** l * q


def clebsch_gordan(l1, l2, l3):
    Q1 = _change_basis_real_to_complex(l1)
    Q2 = _change_basis_real_to_complex(l2)
    Q3 = _change_basis_real_to_complex(l3)
    C = _su2_clebsch_gordan(l1, l2, l3).astype(np.complex128)
    C = np.einsum('ij,kl,mn,ikn->jlm', Q1, Q2, np.conj(Q3.T), C)
    assert np.abs(C.imag).max() < 1e-6
    C = C.real
    n = np.linalg.norm(C)
    if n > 0:
        C = C / n
    return C


# ----------------------------------------------------------------------------
# Real spherical harmonics (standard z-up, orthonormal), l <= 2.
# Returns Y[sum_l (2l+1), N]  (same orientation as the PyTorch module's Y[m, batch]).
# TODO(synk): only l <= 2 implemented; e3nn's exact SH axis/sign convention is not
#             reproduced here (glue, not part of the Pallas kernel).
# ----------------------------------------------------------------------------
def spherical_harmonics_xyz(ls, r):
    x, y, z = r[:, 0], r[:, 1], r[:, 2]
    rn = jnp.sqrt(x * x + y * y + z * z)
    safe = jnp.where(rn > 0, rn, 1.0)
    xn, yn, zn = x / safe, y / safe, z / safe
    rows = []
    for l in ls:
        if l == 0:
            rows.append(jnp.full_like(rn, 0.5 * math.sqrt(1.0 / math.pi)))
        elif l == 1:
            c = math.sqrt(3.0 / (4.0 * math.pi))
            rows += [c * yn, c * zn, c * xn]
        elif l == 2:
            rows += [
                0.5 * math.sqrt(15.0 / math.pi) * xn * yn,
                0.5 * math.sqrt(15.0 / math.pi) * yn * zn,
                0.25 * math.sqrt(5.0 / math.pi) * (3.0 * zn * zn - 1.0),
                0.5 * math.sqrt(15.0 / math.pi) * xn * zn,
                0.25 * math.sqrt(15.0 / math.pi) * (xn * xn - yn * yn),
            ]
        else:
            raise NotImplementedError("spherical harmonics only for l <= 2")
    return jnp.stack(rows, axis=0).astype(jnp.float32)   # [F_total, N]


# ----------------------------------------------------------------------------
# RadialModel: small deterministic MLP (plain-JAX glue; stands in for e3nn's
# trainable RadialModel).
# ----------------------------------------------------------------------------
def init_radial_params(key, n_path, hidden=32):
    k1, k2 = jax.random.split(key)
    w1 = jax.random.normal(k1, (1, hidden), dtype=jnp.float32)
    b1 = jnp.zeros((hidden,), jnp.float32)
    w2 = jax.random.normal(k2, (hidden, n_path), dtype=jnp.float32) / math.sqrt(hidden)
    b2 = jnp.zeros((n_path,), jnp.float32)
    return (w1, b1, w2, b2)


def radial_mlp(radii, params):
    w1, b1, w2, b2 = params
    h = jax.nn.relu(radii[:, None] @ w1 + b1)
    return h @ w2 + b2                                    # [N, n_path]


# ----------------------------------------------------------------------------
# Build the Kernel module (static path metadata + Pallas kernel + forward).
# ----------------------------------------------------------------------------
def build_kernel_module(Rs_in, Rs_out, normalization="norm", max_batch_tile=1024):
    Rs_in = [(int(m), int(l), int(p)) for (m, l, p) in Rs_in]
    Rs_out = [(int(m), int(l), int(p)) for (m, l, p) in Rs_out]
    nO, nI = len(Rs_out), len(Rs_in)
    max_batch_tile = max(128, _round_up(int(max_batch_tile), 128))

    def get_l_filters(l_in, p_in, l_out, p_out):
        ls = list(range(abs(l_in - l_out), l_in + l_out + 1))
        return [l for l in ls if p_out == 0 or p_in * (-1) ** l == p_out]

    # --- norm_coef buffer, n_path, set_of_l_filters (same math as __init__) ---
    norm_coef = np.zeros((nO, nI, 2), np.float32)
    n_path = 0
    set_l = set()
    for i, (mul_out, l_out, p_out) in enumerate(Rs_out):
        num_summed = sum(mul_in * len(get_l_filters(l_in, p_in, l_out, p_out))
                         for mul_in, l_in, p_in in Rs_in)
        for j, (mul_in, l_in, p_in) in enumerate(Rs_in):
            if normalization == "norm":
                lm_norm = math.sqrt(2 * l_in + 1) * math.sqrt(4 * math.pi)
            else:  # 'component'
                lm_norm = math.sqrt(2 * l_out + 1) * math.sqrt(4 * math.pi)
            norm_coef[i, j, 0] = lm_norm / math.sqrt(num_summed)
            norm_coef[i, j, 1] = lm_norm / math.sqrt(mul_in)
            lfs = get_l_filters(l_in, p_in, l_out, p_out)
            n_path += mul_out * mul_in * len(lfs)
            set_l |= set(lfs)
    set_of_l_filters = sorted(set_l)
    F_total = sum(2 * l + 1 for l in set_of_l_filters)
    n_in = sum(m * (2 * l + 1) for m, l, _ in Rs_in)
    n_out = sum(m * (2 * l + 1) for m, l, _ in Rs_out)

    # --- static path-block metadata + CG tensors (numpy, host only) ---
    blocks, c_fulls = [], []
    begin_R, begin_out = 0, 0
    for i, (mul_out, l_out, p_out) in enumerate(Rs_out):
        d_out = 2 * l_out + 1
        s_out = begin_out
        begin_out += mul_out * d_out
        begin_in = 0
        for j, (mul_in, l_in, p_in) in enumerate(Rs_in):
            d_in = 2 * l_in + 1
            s_in = begin_in
            begin_in += mul_in * d_in
            lfs = get_l_filters(l_in, p_in, l_out, p_out)
            if not lfs:
                continue
            c_idx, y_offs = [], []
            for lf in lfs:
                C = clebsch_gordan(l_out, l_in, lf).astype(np.float32)  # [d_out,d_in,2lf+1]
                c_idx.append(len(c_fulls))
                c_fulls.append(C)
                y_offs.append(sum(2 * l + 1 for l in set_of_l_filters if l < lf))
            blocks.append(dict(i=i, j=j, U=mul_out, V=mul_in, d_out=d_out, d_in=d_in,
                               s_out=s_out, s_in=s_in, r_off=begin_R,
                               lfs=lfs, c_idx=c_idx, y_offs=y_offs))
            begin_R += mul_out * mul_in * len(lfs)
    assert begin_R == n_path

    # ------------------------------------------------------------------------
    # MXU formulation metadata:
    #   P[q, z] = norm[block(q), z] * Y[m_row(q), z] * R[path(q), z]
    #   out[(o*n_in + i), z] = sum_q W[(o*n_in + i), q] * P[q, z]
    # W is dense [NOI_pad, Q] (uncovered (l_out,l_in) blocks stay all-zero rows,
    # reproducing `kernel = Y.new_zeros(...)`).  All-zero CG m-slices are skipped.
    # ------------------------------------------------------------------------
    NOI = n_out * n_in
    NOI_pad = _round_up(NOI, 128)   # aligned rows -> (8,128)-friendly in-kernel transpose
    assembly = []                   # (nc_row, y_row, [(p_row, r_row), ...])
    w_entries = []                  # (w_row, p_row, value)
    qn = 0
    for blk in blocks:
        U, V, nk = blk["U"], blk["V"], len(blk["lfs"])
        d_out, d_in = blk["d_out"], blk["d_in"]
        brow = blk["i"] * nI + blk["j"]
        for k, lf in enumerate(blk["lfs"]):
            Cnp = c_fulls[blk["c_idx"][k]]
            yo = blk["y_offs"][k]
            for m in range(2 * lf + 1):
                Cm = Cnp[:, :, m]
                if not np.any(Cm):                       # CG sparsity: skip zero slices
                    continue
                nz = [(I, J, float(Cm[I, J]))
                      for I in range(d_out) for J in range(d_in) if Cm[I, J] != 0.0]
                entries = []
                for u in range(U):
                    for v in range(V):
                        prow = blk["r_off"] + (u * V + v) * nk + k
                        for (I, J, cval) in nz:
                            wrow = ((blk["s_out"] + u * d_out + I) * n_in
                                    + (blk["s_in"] + v * d_in + J))
                            w_entries.append((wrow, qn, cval))
                        entries.append((qn, prow))
                        qn += 1
                assembly.append((brow, yo + m, entries))
    Q = qn
    assert Q > 0
    W_np = np.zeros((NOI_pad, Q), np.float32)
    for (wrow, qc, val) in w_entries:
        W_np[wrow, qc] = val
    W_j = jnp.asarray(W_np)
    # TODO(synk): for very large multiplicities (Q or n_out*n_in in the thousands),
    #             switch the P assembly to lax.fori_loop with SMEM index tables and
    #             tile W over output rows (extra grid axis) to respect v7x's 64 MiB VMEM.

    # ------------------------------------------------------------------------
    # Pallas kernel.  Batch rides the lane axis.  Per batch tile:
    #   1) VPU: assemble P rows into VMEM scratch ((k,m) outer -> each Y*norm vreg
    #      product is reused across all (u,v) paths, then dies).
    #   2) MXU: dense = W @ P  -> [NOI_pad, TB].
    #   3) One aligned in-VMEM transpose + one packed batch-major store per tile
    #      (no wrapper-side HBM transpose of the output).
    # ------------------------------------------------------------------------
    def kfn(w_ref, y_ref, r_ref, nc_ref, out_ref, p_ref):
        for (brow, yrow, entries) in assembly:
            yn = y_ref[yrow, :] * nc_ref[brow, :]
            for (q, prow) in entries:
                p_ref[q, :] = yn * r_ref[prow, :]
        dense = jnp.dot(w_ref[...], p_ref[...],
                        preferred_element_type=jnp.float32)          # [NOI_pad, TB]
        out_ref[...] = jnp.transpose(dense, (1, 0))[:, :NOI]          # [TB, NOI]

    def _vmem_est(tb):
        return 4 * (2 * (F_total + n_path + nO * nI) * tb   # double-buffered inputs
                    + 2 * NOI_pad * Q                        # W tile
                    + 2 * tb * NOI                           # double-buffered output tile
                    + Q * tb)                                # P scratch

    def _choose_tile(N):
        npad = _round_up(max(N, 1), 128)
        # target >= ~1 MiB of output per grid step to amortize per-step overhead
        tb = _round_up(_cdiv(1 << 20, max(NOI * 4, 1)), 128)
        tb = max(128, min(tb, max_batch_tile, npad))
        # keep >= 2 grid steps when the batch allows it (v7x has 2 TensorCores)
        if npad >= 256 and npad // tb < 2:
            tb = max(128, _round_up(_cdiv(npad, 2), 128))
        while tb > 128 and _vmem_est(tb) > (24 << 20):
            tb -= 128
        return tb

    def assemble(Y, Rt, ncb, TB, Np):
        grid = (Np // TB,)
        vmem_limit = int(min(64 << 20, max(32 << 20, 2 * _vmem_est(TB))))
        return pl.pallas_call(
            kfn,
            out_shape=jax.ShapeDtypeStruct((Np, NOI), jnp.float32),
            grid=grid,
            in_specs=[
                pl.BlockSpec((NOI_pad, Q), lambda b: (0, 0)),     # W (constant tile)
                pl.BlockSpec((F_total, TB), lambda b: (0, b)),    # Y  [F_total, N]
                pl.BlockSpec((n_path, TB), lambda b: (0, b)),     # R  [n_path,  N]
                pl.BlockSpec((nO * nI, TB), lambda b: (0, b)),    # norm coefs [nO*nI, N]
            ],
            out_specs=pl.BlockSpec((TB, NOI), lambda b: (b, 0)),
            scratch_shapes=[pltpu.VMEM((Q, TB), jnp.float32)],
            compiler_params=pltpu.CompilerParams(
                dimension_semantics=("parallel",),
                vmem_limit_bytes=vmem_limit),
        )(W_j, Y, Rt, ncb)

    norm_coef_j = jnp.asarray(norm_coef)

    def forward(r, radial_params):
        size = r.shape[:-1]
        assert r.shape[-1] == 3
        r2 = r.reshape(-1, 3).astype(jnp.float32)
        N = r2.shape[0]
        Y = spherical_harmonics_xyz(set_of_l_filters, r2)             # [F_total, N]
        radii = jnp.sqrt(jnp.sum(r2 * r2, axis=1))
        R = radial_mlp(radii, radial_params)                          # [N, n_path]
        Rt = jnp.transpose(R)                                         # [n_path, N]
        sel = (radii == 0).astype(jnp.int32)
        ncb = norm_coef_j[:, :, sel].reshape(nO * nI, N)              # [nO*nI, N]

        TB = _choose_tile(N)
        Np = _round_up(max(N, 1), TB)
        pad = Np - N
        if pad:
            Y = jnp.pad(Y, ((0, 0), (0, pad)))
            Rt = jnp.pad(Rt, ((0, 0), (0, pad)))
            ncb = jnp.pad(ncb, ((0, 0), (0, pad)))

        out2d = assemble(Y, Rt, ncb, TB, Np)                          # [Np, n_out*n_in]
        out = out2d[:N].reshape(N, n_out, n_in)                       # free reshape
        return out.reshape(*size, n_out, n_in)

    # plain-JAX reference (mirrors KernelFn.forward) for a correctness check
    def reference(r, radial_params):
        size = r.shape[:-1]
        r2 = r.reshape(-1, 3).astype(jnp.float32)
        N = r2.shape[0]
        Y = spherical_harmonics_xyz(set_of_l_filters, r2)             # [F_total, N]
        radii = jnp.sqrt(jnp.sum(r2 * r2, axis=1))
        R = radial_mlp(radii, radial_params)
        sel = (radii == 0).astype(jnp.int32)
        nc = norm_coef_j[:, :, sel]                                   # [nO, nI, N]
        out = jnp.zeros((N, n_out, n_in), jnp.float32)
        for blk in blocks:
            U, V, d_out, d_in = blk["U"], blk["V"], blk["d_out"], blk["d_in"]
            nk = len(blk["lfs"])
            sub_R = R[:, blk["r_off"]:blk["r_off"] + U * V * nk].reshape(N, U, V, nk)
            sub_norm = nc[blk["i"], blk["j"]]
            K = jnp.zeros((N, U, d_out, V, d_in), jnp.float32)
            for k, lf in enumerate(blk["lfs"]):
                yo = blk["y_offs"][k]
                sub_Y = Y[yo:yo + 2 * lf + 1, :]
                C = jnp.asarray(c_fulls[blk["c_idx"][k]])
                K = K + jnp.einsum("ijk,kz,zuv,z->zuivj", C, sub_Y, sub_R[..., k], sub_norm)
            out = out.at[:, blk["s_out"]:blk["s_out"] + U * d_out,
                            blk["s_in"]:blk["s_in"] + V * d_in].set(
                K.reshape(N, U * d_out, V * d_in))
        return out.reshape(*size, n_out, n_in)

    return dict(forward=forward, reference=reference, n_path=n_path,
                n_in=n_in, n_out=n_out, set_of_l_filters=set_of_l_filters)


if __name__ == "__main__":
    # Rs = [(multiplicity, l, parity)]
    Rs_in = [(2, 0, 0), (2, 1, 0)]
    Rs_out = [(2, 0, 0), (2, 1, 0)]
    mod = build_kernel_module(Rs_in, Rs_out, normalization="norm")

    key = jax.random.PRNGKey(0)
    kr, kp = jax.random.split(key)
    r = jax.random.normal(kr, (2, 8, 3), dtype=jnp.float32)       # [..., 3]
    params = init_radial_params(kp, mod["n_path"], hidden=32)

    out = jax.block_until_ready(mod["forward"](r, params))
    assert out.shape == (2, 8, mod["n_out"], mod["n_in"])
    assert out.dtype == jnp.float32

    ref = jax.block_until_ready(mod["reference"](r, params))
    assert np.allclose(np.asarray(out), np.asarray(ref), atol=5e-3, rtol=5e-3)

    print("KERNEL_OK")
</pallas_src>

<mosaic_0001>
module attributes {stable_mosaic.version = 11 : i64} {
  func.func @kfn(%arg0: i32, %arg1: memref<128x64xf32, #tpu.memory_space<vmem>>, %arg2: memref<9x128xf32, #tpu.memory_space<vmem>>, %arg3: memref<24x128xf32, #tpu.memory_space<vmem>>, %arg4: memref<4x128xf32, #tpu.memory_space<vmem>>, %arg5: memref<128x64xf32, #tpu.memory_space<vmem>>, %arg6: memref<64x128xf32, #tpu.memory_space<vmem>>) attributes {dimension_semantics = [#tpu.dimension_semantics<parallel>], iteration_bounds = array<i64: 1>, scalar_prefetch = 0 : i64, scratch_operands = 1 : i64, tpu.core_type = #tpu.core_type<tc>, window_params = [{pipeline_mode = #tpu.pipeline_mode<synchronous>, transform_indices = @transform_0, window_bounds = array<i64: 128, 64>}, {transform_indices = @transform_1, window_bounds = array<i64: 9, 128>}, {transform_indices = @transform_2, window_bounds = array<i64: 24, 128>}, {transform_indices = @transform_3, window_bounds = array<i64: 4, 128>}, {transform_indices = @transform_4, window_bounds = array<i64: 128, 64>}]} {
    %c0 = arith.constant 0 : index
    %c0_0 = arith.constant 0 : index
    %0 = vector.load %arg2[%c0, %c0_0] : memref<9x128xf32, #tpu.memory_space<vmem>>, vector<1x128xf32>
    %1 = vector.shape_cast %0 : vector<1x128xf32> to vector<128xf32>
    %c0_1 = arith.constant 0 : index
    %c0_2 = arith.constant 0 : index
    %2 = vector.load %arg4[%c0_1, %c0_2] : memref<4x128xf32, #tpu.memory_space<vmem>>, vector<1x128xf32>
    %3 = vector.shape_cast %2 : vector<1x128xf32> to vector<128xf32>
    %4 = arith.mulf %1, %3 : vector<128xf32>
    %c0_3 = arith.constant 0 : index
    %c0_4 = arith.constant 0 : index
    %5 = vector.load %arg3[%c0_3, %c0_4] : memref<24x128xf32, #tpu.memory_space<vmem>>, vector<1x128xf32>
    %6 = vector.shape_cast %5 : vector<1x128xf32> to vector<128xf32>
    %7 = arith.mulf %4, %6 : vector<128xf32>
    %c0_5 = arith.constant 0 : index
    %c0_6 = arith.constant 0 : index
    %8 = vector.load %arg6[%c0_5, %c0_6] : memref<64x128xf32, #tpu.memory_space<vmem>>, vector<1x128xf32>
    %9 = vector.shape_cast %8 : vector<1x128xf32> to vector<128xf32>
    %10 = vector.shape_cast %7 : vector<128xf32> to vector<1x128xf32>
    tpu.vector_store %arg6[%c0_5, %c0_6], %10 {strides = array<i32>} : memref<64x128xf32, #tpu.memory_space<vmem>>, vector<1x128xf32>,
    %c1 = arith.constant 1 : index
    %c0_7 = arith.constant 0 : index
    %11 = vector.load %arg3[%c1, %c0_7] : memref<24x128xf32, #tpu.memory_space<vmem>>, vector<1x128xf32>
    %12 = vector.shape_cast %11 : vector<1x128xf32> to vector<128xf32>
    %13 = arith.mulf %4, %12 : vector<128xf32>
    %c1_8 = arith.constant 1 : index
    %c0_9 = arith.constant 0 : index
    %14 = vector.load %arg6[%c1_8, %c0_9] : memref<64x128xf32, #tpu.memory_space<vmem>>, vector<1x128xf32>
    %15 = vector.shape_cast %14 : vector<1x128xf32> to vector<128xf32>
    %16 = vector.shape_cast %13 : vector<128xf32> to vector<1x128xf32>
    tpu.vector_store %arg6[%c1_8, %c0_9], %16 {strides = array<i32>} : memref<64x128xf32, #tpu.memory_space<vmem>>, vector<1x128xf32>,
    %c2 = arith.constant 2 : index
    %c0_10 = arith.constant 0 : index
    %17 = vector.load %arg3[%c2, %c0_10] : memref<24x128xf32, #tpu.memory_space<vmem>>, vector<1x128xf32>
    %18 = vector.shape_cast %17 : vector<1x128xf32> to vector<128xf32>
    %19 = arith.mulf %4, %18 : vector<128xf32>
    %c2_11 = arith.constant 2 : index
    %c0_12 = arith.constant 0 : index
    %20 = vector.load %arg6[%c2_11, %c0_12] : memref<64x128xf32, #tpu.memory_space<vmem>>, vector<1x128xf32>
    %21 = vector.shape_cast %20 : vector<1x128xf32> to vector<128xf32>
    %22 = vector.shape_cast %19 : vector<128xf32> to vector<1x128xf32>
    tpu.vector_store %arg6[%c2_11, %c0_12], %22 {strides = array<i32>} : memref<64x128xf32, #tpu.memory_space<vmem>>, vector<1x128xf32>,
    %c3 = arith.constant 3 : index
    %c0_13 = arith.constant 0 : index
    %23 = vector.load %arg3[%c3, %c0_13] : memref<24x128xf32, #tpu.memory_space<vmem>>, vector<1x128xf32>
    %24 = vector.shape_cast %23 : vector<1x128xf32> to vector<128xf32>
    %25 = arith.mulf %4, %24 : vector<128xf32>
    %c3_14 = arith.constant 3 : index
    %c0_15 = arith.constant 0 : index
    %26 = vector.load %arg6[%c3_14, %c0_15] : memref<64x128xf32, #tpu.memory_space<vmem>>, vector<1x128xf32>
    %27 = vector.shape_cast %26 : vector<1x128xf32> to vector<128xf32>
    %28 = vector.shape_cast %25 : vector<128xf32> to vector<1x128xf32>
    tpu.vector_store %arg6[%c3_14, %c0_15], %28 {strides = array<i32>} : memref<64x128xf32, #tpu.memory_space<vmem>>, vector<1x128xf32>,
    %c1_16 = arith.constant 1 : index
    %c0_17 = arith.constant 0 : index
    %29 = vector.load %arg2[%c1_16, %c0_17] : memref<9x128xf32, #tpu.memory_space<vmem>>, vector<1x128xf32>
    %30 = vector.shape_cast %29 : vector<1x128xf32> to vector<128xf32>
    %c1_18 = arith.constant 1 : index
    %c0_19 = arith.constant 0 : index
    %31 = vector.load %arg4[%c1_18, %c0_19] : memref<4x128xf32, #tpu.memory_space<vmem>>, vector<1x128xf32>
    %32 = vector.shape_cast %31 : vector<1x128xf32> to vector<128xf32>
    %33 = arith.mulf %30, %32 : vector<128xf32>
    %c4 = arith.constant 4 : index
    %c0_20 = arith.constant 0 : index
    %34 = vector.load %arg3[%c4, %c0_20] : memref<24x128xf32, #tpu.memory_space<vmem>>, vector<1x128xf32>
    %35 = vector.shape_cast %34 : vector<1x128xf32> to vector<128xf32>
    %36 = arith.mulf %33, %35 : vector<128xf32>
    %c4_21 = arith.constant 4 : index
    %c0_22 = arith.constant 0 : index
    %37 = vector.load %arg6[%c4_21, %c0_22] : memref<64x128xf32, #tpu.memory_space<vmem>>, vector<1x128xf32>
    %38 = vector.shape_cast %37 : vector<1x128xf32> to vector<128xf32>
    %39 = vector.shape_cast %36 : vector<128xf32> to vector<1x128xf32>
    tpu.vector_store %arg6[%c4_21, %c0_22], %39 {strides = array<i32>} : memref<64x128xf32, #tpu.memory_space<vmem>>, vector<1x128xf32>,
    %c5 = arith.constant 5 : index
    %c0_23 = arith.constant 0 : index
    %40 = vector.load %arg3[%c5, %c0_23] : memref<24x128xf32, #tpu.memory_space<vmem>>, vector<1x128xf32>
    %41 = vector.shape_cast %40 : vector<1x128xf32> to vector<128xf32>
    %42 = arith.mulf %33, %41 : vector<128xf32>
    %c5_24 = arith.constant 5 : index
    %c0_25 = arith.constant 0 : index
    %43 = vector.load %arg6[%c5_24, %c0_25] : memref<64x128xf32, #tpu.memory_space<vmem>>, vector<1x128xf32>
    %44 = vector.shape_cast %43 : vector<1x128xf32> to vector<128xf32>
    %45 = vector.shape_cast %42 : vector<128xf32> to vector<1x128xf32>
    tpu.vector_store %arg6[%c5_24, %c0_25], %45 {strides = array<i32>} : memref<64x128xf32, #tpu.memory_space<vmem>>, vector<1x128xf32>,
    %c6 = arith.constant 6 : index
    %c0_26 = arith.constant 0 : index
    %46 = vector.load %arg3[%c6, %c0_26] : memref<24x128xf32, #tpu.memory_space<vmem>>, vector<1x128xf32>
    %47 = vector.shape_cast %46 : vector<1x128xf32> to vector<128xf32>
    %48 = arith.mulf %33, %47 : vector<128xf32>
    %c6_27 = arith.constant 6 : index
    %c0_28 = arith.constant 0 : index
    %49 = vector.load %arg6[%c6_27, %c0_28] : memref<64x128xf32, #tpu.memory_space<vmem>>, vector<1x128xf32>
    %50 = vector.shape_cast %49 : vector<1x128xf32> to vector<128xf32>
    %51 = vector.shape_cast %48 : vector<128xf32> to vector<1x128xf32>
    tpu.vector_store %arg6[%c6_27, %c0_28], %51 {strides = array<i32>} : memref<64x128xf32, #tpu.memory_space<vmem>>, vector<1x128xf32>,
    %c7 = arith.constant 7 : index
    %c0_29 = arith.constant 0 : index
    %52 = vector.load %arg3[%c7, %c0_29] : memref<24x128xf32, #tpu.memory_space<vmem>>, vector<1x128xf32>
    %53 = vector.shape_cast %52 : vector<1x128xf32> to vector<128xf32>
    %54 = arith.mulf %33, %53 : vector<128xf32>
    %c7_30 = arith.constant 7 : index
    %c0_31 = arith.constant 0 : index
    %55 = vector.load %arg6[%c7_30, %c0_31] : memref<64x128xf32, #tpu.memory_space<vmem>>, vector<1x128xf32>
    %56 = vector.shape_cast %55 : vector<1x128xf32> to vector<128xf32>
    %57 = vector.shape_cast %54 : vector<128xf32> to vector<1x128xf32>
    tpu.vector_store %arg6[%c7_30, %c0_31], %57 {strides = array<i32>} : memref<64x128xf32, #tpu.memory_space<vmem>>, vector<1x128xf32>,
    %c2_32 = arith.constant 2 : index
    %c0_33 = arith.constant 0 : index
    %58 = vector.load %arg2[%c2_32, %c0_33] : memref<9x128xf32, #tpu.memory_space<vmem>>, vector<1x128xf32>
    %59 = vector.shape_cast %58 : vector<1x128xf32> to vector<128xf32>
    %c1_34 = arith.constant 1 : index
    %c0_35 = arith.constant 0 : index
    %60 = vector.load %arg4[%c1_34, %c0_35] : memref<4x128xf32, #tpu.memory_space<vmem>>, vector<1x128xf32>
    %61 = vector.shape_cast %60 : vector<1x128xf32> to vector<128xf32>
    %62 = arith.mulf %59, %61 : vector<128xf32>
    %c4_36 = arith.constant 4 : index
    %c0_37 = arith.constant 0 : index
    %63 = vector.load %arg3[%c4_36, %c0_37] : memref<24x128xf32, #tpu.memory_space<vmem>>, vector<1x128xf32>
    %64 = vector.shape_cast %63 : vector<1x128xf32> to vector<128xf32>
    %65 = arith.mulf %62, %64 : vector<128xf32>
    %c8 = arith.constant 8 : index
    %c0_38 = arith.constant 0 : index
    %66 = vector.load %arg6[%c8, %c0_38] : memref<64x128xf32, #tpu.memory_space<vmem>>, vector<1x128xf32>
    %67 = vector.shape_cast %66 : vector<1x128xf32> to vector<128xf32>
    %68 = vector.shape_cast %65 : vector<128xf32> to vector<1x128xf32>
    tpu.vector_store %arg6[%c8, %c0_38], %68 {strides = array<i32>} : memref<64x128xf32, #tpu.memory_space<vmem>>, vector<1x128xf32>,
    %c5_39 = arith.constant 5 : index
    %c0_40 = arith.constant 0 : index
    %69 = vector.load %arg3[%c5_39, %c0_40] : memref<24x128xf32, #tpu.memory_space<vmem>>, vector<1x128xf32>
    %70 = vector.shape_cast %69 : vector<1x128xf32> to vector<128xf32>
    %71 = arith.mulf %62, %70 : vector<128xf32>
    %c9 = arith.constant 9 : index
    %c0_41 = arith.constant 0 : index
    %72 = vector.load %arg6[%c9, %c0_41] : memref<64x128xf32, #tpu.memory_space<vmem>>, vector<1x128xf32>
    %73 = vector.shape_cast %72 : vector<1x128xf32> to vector<128xf32>
    %74 = vector.shape_cast %71 : vector<128xf32> to vector<1x128xf32>
    tpu.vector_store %arg6[%c9, %c0_41], %74 {strides = array<i32>} : memref<64x128xf32, #tpu.memory_space<vmem>>, vector<1x128xf32>,
    %c6_42 = arith.constant 6 : index
    %c0_43 = arith.constant 0 : index
    %75 = vector.load %arg3[%c6_42, %c0_43] : memref<24x128xf32, #tpu.memory_space<vmem>>, vector<1x128xf32>
    %76 = vector.shape_cast %75 : vector<1x128xf32> to vector<128xf32>
    %77 = arith.mulf %62, %76 : vector<128xf32>
    %c10 = arith.constant 10 : index
    %c0_44 = arith.constant 0 : index
    %78 = vector.load %arg6[%c10, %c0_44] : memref<64x128xf32, #tpu.memory_space<vmem>>, vector<1x128xf32>
    %79 = vector.shape_cast %78 : vector<1x128xf32> to vector<128xf32>
    %80 = vector.shape_cast %77 : vector<128xf32> to vector<1x128xf32>
    tpu.vector_store %arg6[%c10, %c0_44], %80 {strides = array<i32>} : memref<64x128xf32, #tpu.memory_space<vmem>>, vector<1x128xf32>,
    %c7_45 = arith.constant 7 : index
    %c0_46 = arith.constant 0 : index
    %81 = vector.load %arg3[%c7_45, %c0_46] : memref<24x128xf32, #tpu.memory_space<vmem>>, vector<1x128xf32>
    %82 = vector.shape_cast %81 : vector<1x128xf32> to vector<128xf32>
    %83 = arith.mulf %62, %82 : vector<128xf32>
    %c11 = arith.constant 11 : index
    %c0_47 = arith.constant 0 : index
    %84 = vector.load %arg6[%c11, %c0_47] : memref<64x128xf32, #tpu.memory_space<vmem>>, vector<1x128xf32>
    %85 = vector.shape_cast %84 : vector<1x128xf32> to vector<128xf32>
    %86 = vector.shape_cast %83 : vector<128xf32> to vector<1x128xf32>
    tpu.vector_store %arg6[%c11, %c0_47], %86 {strides = array<i32>} : memref<64x128xf32, #tpu.memory_space<vmem>>, vector<1x128xf32>,
    %c3_48 = arith.constant 3 : index
    %c0_49 = arith.constant 0 : index
    %87 = vector.load %arg2[%c3_48, %c0_49] : memref<9x128xf32, #tpu.memory_space<vmem>>, vector<1x128xf32>
    %88 = vector.shape_cast %87 : vector<1x128xf32> to vector<128xf32>
    %c1_50 = arith.constant 1 : index
    %c0_51 = arith.constant 0 : index
    %89 = vector.load %arg4[%c1_50, %c0_51] : memref<4x128xf32, #tpu.memory_space<vmem>>, vector<1x128xf32>
    %90 = vector.shape_cast %89 : vector<1x128xf32> to vector<128xf32>
    %91 = arith.mulf %88, %90 : vector<128xf32>
    %c4_52 = arith.constant 4 : index
    %c0_53 = arith.constant 0 : index
    %92 = vector.load %arg3[%c4_52, %c0_53] : memref<24x128xf32, #tpu.memory_space<vmem>>, vector<1x128xf32>
    %93 = vector.shape_cast %92 : vector<1x128xf32> to vector<128xf32>
    %94 = arith.mulf %91, %93 : vector<128xf32>
    %c12 = arith.constant 12 : index
    %c0_54 = arith.constant 0 : index
    %95 = vector.load %arg6[%c12, %c0_54] : memref<64x128xf32, #tpu.memory_space<vmem>>, vector<1x128xf32>
    %96 = vector.shape_cast %95 : vector<1x128xf32> to vector<128xf32>
    %97 = vector.shape_cast %94 : vector<128xf32> to vector<1x128xf32>
    tpu.vector_store %arg6[%c12, %c0_54], %97 {strides = array<i32>} : memref<64x128xf32, #tpu.memory_space<vmem>>, vector<1x128xf32>,
    %c5_55 = arith.constant 5 : index
    %c0_56 = arith.constant 0 : index
    %98 = vector.load %arg3[%c5_55, %c0_56] : memref<24x128xf32, #tpu.memory_space<vmem>>, vector<1x128xf32>
    %99 = vector.shape_cast %98 : vector<1x128xf32> to vector<128xf32>
    %100 = arith.mulf %91, %99 : vector<128xf32>
    %c13 = arith.constant 13 : index
    %c0_57 = arith.constant 0 : index
    %101 = vector.load %arg6[%c13, %c0_57] : memref<64x128xf32, #tpu.memory_space<vmem>>, vector<1x128xf32>
    %102 = vector.shape_cast %101 : vector<1x128xf32> to vector<128xf32>
    %103 = vector.shape_cast %100 : vector<128xf32> to vector<1x128xf32>
    tpu.vector_store %arg6[%c13, %c0_57], %103 {strides = array<i32>} : memref<64x128xf32, #tpu.memory_space<vmem>>, vector<1x128xf32>,
    %c6_58 = arith.constant 6 : index
    %c0_59 = arith.constant 0 : index
    %104 = vector.load %arg3[%c6_58, %c0_59] : memref<24x128xf32, #tpu.memory_space<vmem>>, vector<1x128xf32>
    %105 = vector.shape_cast %104 : vector<1x128xf32> to vector<128xf32>
    %106 = arith.mulf %91, %105 : vector<128xf32>
    %c14 = arith.constant 14 : index
    %c0_60 = arith.constant 0 : index
    %107 = vector.load %arg6[%c14, %c0_60] : memref<64x128xf32, #tpu.memory_space<vmem>>, vector<1x128xf32>
    %108 = vector.shape_cast %107 : vector<1x128xf32> to vector<128xf32>
    %109 = vector.shape_cast %106 : vector<128xf32> to vector<1x128xf32>
    tpu.vector_store %arg6[%c14, %c0_60], %109 {strides = array<i32>} : memref<64x128xf32, #tpu.memory_space<vmem>>, vector<1x128xf32>,
    %c7_61 = arith.constant 7 : index
    %c0_62 = arith.constant 0 : index
    %110 = vector.load %arg3[%c7_61, %c0_62] : memref<24x128xf32, #tpu.memory_space<vmem>>, vector<1x128xf32>
    %111 = vector.shape_cast %110 : vector<1x128xf32> to vector<128xf32>
    %112 = arith.mulf %91, %111 : vector<128xf32>
    %c15 = arith.constant 15 : index
    %c0_63 = arith.constant 0 : index
    %113 = vector.load %arg6[%c15, %c0_63] : memref<64x128xf32, #tpu.memory_space<vmem>>, vector<1x128xf32>
    %114 = vector.shape_cast %113 : vector<1x128xf32> to vector<128xf32>
    %115 = vector.shape_cast %112 : vector<128xf32> to vector<1x128xf32>
    tpu.vector_store %arg6[%c15, %c0_63], %115 {strides = array<i32>} : memref<64x128xf32, #tpu.memory_space<vmem>>, vector<1x128xf32>,
    %c1_64 = arith.constant 1 : index
    %c0_65 = arith.constant 0 : index
    %116 = vector.load %arg2[%c1_64, %c0_65] : memref<9x128xf32, #tpu.memory_space<vmem>>, vector<1x128xf32>
    %117 = vector.shape_cast %116 : vector<1x128xf32> to vector<128xf32>
    %c2_66 = arith.constant 2 : index
    %c0_67 = arith.constant 0 : index
    %118 = vector.load %arg4[%c2_66, %c0_67] : memref<4x128xf32, #tpu.memory_space<vmem>>, vector<1x128xf32>
    %119 = vector.shape_cast %118 : vector<1x128xf32> to vector<128xf32>
    %120 = arith.mulf %117, %119 : vector<128xf32>
    %c8_68 = arith.constant 8 : index
    %c0_69 = arith.constant 0 : index
    %121 = vector.load %arg3[%c8_68, %c0_69] : memref<24x128xf32, #tpu.memory_space<vmem>>, vector<1x128xf32>
    %122 = vector.shape_cast %121 : vector<1x128xf32> to vector<128xf32>
    %123 = arith.mulf %120, %122 : vector<128xf32>
    %c16 = arith.constant 16 : index
    %c0_70 = arith.constant 0 : index
    %124 = vector.load %arg6[%c16, %c0_70] : memref<64x128xf32, #tpu.memory_space<vmem>>, vector<1x128xf32>
    %125 = vector.shape_cast %124 : vector<1x128xf32> to vector<128xf32>
    %126 = vector.shape_cast %123 : vector<128xf32> to vector<1x128xf32>
    tpu.vector_store %arg6[%c16, %c0_70], %126 {strides = array<i32>} : memref<64x128xf32, #tpu.memory_space<vmem>>, vector<1x128xf32>,
    %c9_71 = arith.constant 9 : index
    %c0_72 = arith.constant 0 : index
    %127 = vector.load %arg3[%c9_71, %c0_72] : memref<24x128xf32, #tpu.memory_space<vmem>>, vector<1x128xf32>
    %128 = vector.shape_cast %127 : vector<1x128xf32> to vector<128xf32>
    %129 = arith.mulf %120, %128 : vector<128xf32>
    %c17 = arith.constant 17 : index
    %c0_73 = arith.constant 0 : index
    %130 = vector.load %arg6[%c17, %c0_73] : memref<64x128xf32, #tpu.memory_space<vmem>>, vector<1x128xf32>
    %131 = vector.shape_cast %130 : vector<1x128xf32> to vector<128xf32>
    %132 = vector.shape_cast %129 : vector<128xf32> to vector<1x128xf32>
    tpu.vector_store %arg6[%c17, %c0_73], %132 {strides = array<i32>} : memref<64x128xf32, #tpu.memory_space<vmem>>, vector<1x128xf32>,
    %c10_74 = arith.constant 10 : index
    %c0_75 = arith.constant 0 : index
    %133 = vector.load %arg3[%c10_74, %c0_75] : memref<24x128xf32, #tpu.memory_space<vmem>>, vector<1x128xf32>
    %134 = vector.shape_cast %133 : vector<1x128xf32> to vector<128xf32>
    %135 = arith.mulf %120, %134 : vector<128xf32>
    %c18 = arith.constant 18 : index
    %c0_76 = arith.constant 0 : index
    %136 = vector.load %arg6[%c18, %c0_76] : memref<64x128xf32, #tpu.memory_space<vmem>>, vector<1x128xf32>
    %137 = vector.shape_cast %136 : vector<1x128xf32> to vector<128xf32>
    %138 = vector.shape_cast %135 : vector<128xf32> to vector<1x128xf32>
    tpu.vector_store %arg6[%c18, %c0_76], %138 {strides = array<i32>} : memref<64x128xf32, #tpu.memory_space<vmem>>, vector<1x128xf32>,
    %c11_77 = arith.constant 11 : index
    %c0_78 = arith.constant 0 : index
    %139 = vector.load %arg3[%c11_77, %c0_78] : memref<24x128xf32, #tpu.memory_space<vmem>>, vector<1x128xf32>
    %140 = vector.shape_cast %139 : vector<1x128xf32> to vector<128xf32>
    %141 = arith.mulf %120, %140 : vector<128xf32>
    %c19 = arith.constant 19 : index
    %c0_79 = arith.constant 0 : index
    %142 = vector.load %arg6[%c19, %c0_79] : memref<64x128xf32, #tpu.memory_space<vmem>>, vector<1x128xf32>
    %143 = vector.shape_cast %142 : vector<1x128xf32> to vector<128xf32>
    %144 = vector.shape_cast %141 : vector<128xf32> to vector<1x128xf32>
    tpu.vector_store %arg6[%c19, %c0_79], %144 {strides = array<i32>} : memref<64x128xf32, #tpu.memory_space<vmem>>, vector<1x128xf32>,
    %c2_80 = arith.constant 2 : index
    %c0_81 = arith.constant 0 : index
    %145 = vector.load %arg2[%c2_80, %c0_81] : memref<9x128xf32, #tpu.memory_space<vmem>>, vector<1x128xf32>
    %146 = vector.shape_cast %145 : vector<1x128xf32> to vector<128xf32>
    %c2_82 = arith.constant 2 : index
    %c0_83 = arith.constant 0 : index
    %147 = vector.load %arg4[%c2_82, %c0_83] : memref<4x128xf32, #tpu.memory_space<vmem>>, vector<1x128xf32>
    %148 = vector.shape_cast %147 : vector<1x128xf32> to vector<128xf32>
    %149 = arith.mulf %146, %148 : vector<128xf32>
    %c8_84 = arith.constant 8 : index
    %c0_85 = arith.constant 0 : index
    %150 = vector.load %arg3[%c8_84, %c0_85] : memref<24x128xf32, #tpu.memory_space<vmem>>, vector<1x128xf32>
    %151 = vector.shape_cast %150 : vector<1x128xf32> to vector<128xf32>
    %152 = arith.mulf %149, %151 : vector<128xf32>
    %c20 = arith.constant 20 : index
    %c0_86 = arith.constant 0 : index
    %153 = vector.load %arg6[%c20, %c0_86] : memref<64x128xf32, #tpu.memory_space<vmem>>, vector<1x128xf32>
    %154 = vector.shape_cast %153 : vector<1x128xf32> to vector<128xf32>
    %155 = vector.shape_cast %152 : vector<128xf32> to vector<1x128xf32>
    tpu.vector_store %arg6[%c20, %c0_86], %155 {strides = array<i32>} : memref<64x128xf32, #tpu.memory_space<vmem>>, vector<1x128xf32>,
    %c9_87 = arith.constant 9 : index
    %c0_88 = arith.constant 0 : index
    %156 = vector.load %arg3[%c9_87, %c0_88] : memref<24x128xf32, #tpu.memory_space<vmem>>, vector<1x128xf32>
    %157 = vector.shape_cast %156 : vector<1x128xf32> to vector<128xf32>
    %158 = arith.mulf %149, %157 : vector<128xf32>
    %c21 = arith.constant 21 : index
    %c0_89 = arith.constant 0 : index
    %159 = vector.load %arg6[%c21, %c0_89] : memref<64x128xf32, #tpu.memory_space<vmem>>, vector<1x128xf32>
    %160 = vector.shape_cast %159 : vector<1x128xf32> to vector<128xf32>
    %161 = vector.shape_cast %158 : vector<128xf32> to vector<1x128xf32>
    tpu.vector_store %arg6[%c21, %c0_89], %161 {strides = array<i32>} : memref<64x128xf32, #tpu.memory_space<vmem>>, vector<1x128xf32>,
    %c10_90 = arith.constant 10 : index
    %c0_91 = arith.constant 0 : index
    %162 = vector.load %arg3[%c10_90, %c0_91] : memref<24x128xf32, #tpu.memory_space<vmem>>, vector<1x128xf32>
    %163 = vector.shape_cast %162 : vector<1x128xf32> to vector<128xf32>
    %164 = arith.mulf %149, %163 : vector<128xf32>
    %c22 = arith.constant 22 : index
    %c0_92 = arith.constant 0 : index
    %165 = vector.load %arg6[%c22, %c0_92] : memref<64x128xf32, #tpu.memory_space<vmem>>, vector<1x128xf32>
    %166 = vector.shape_cast %165 : vector<1x128xf32> to vector<128xf32>
    %167 = vector.shape_cast %164 : vector<128xf32> to vector<1x128xf32>
    tpu.vector_store %arg6[%c22, %c0_92], %167 {strides = array<i32>} : memref<64x128xf32, #tpu.memory_space<vmem>>, vector<1x128xf32>,
    %c11_93 = arith.constant 11 : index
    %c0_94 = arith.constant 0 : index
    %168 = vector.load %arg3[%c11_93, %c0_94] : memref<24x128xf32, #tpu.memory_space<vmem>>, vector<1x128xf32>
    %169 = vector.shape_cast %168 : vector<1x128xf32> to vector<128xf32>
    %170 = arith.mulf %149, %169 : vector<128xf32>
    %c23 = arith.constant 23 : index
    %c0_95 = arith.constant 0 : index
    %171 = vector.load %arg6[%c23, %c0_95] : memref<64x128xf32, #tpu.memory_space<vmem>>, vector<1x128xf32>
    %172 = vector.shape_cast %171 : vector<1x128xf32> to vector<128xf32>
    %173 = vector.shape_cast %170 : vector<128xf32> to vector<1x128xf32>
    tpu.vector_store %arg6[%c23, %c0_95], %173 {strides = array<i32>} : memref<64x128xf32, #tpu.memory_space<vmem>>, vector<1x128xf32>,
    %c3_96 = arith.constant 3 : index
    %c0_97 = arith.constant 0 : index
    %174 = vector.load %arg2[%c3_96, %c0_97] : memref<9x128xf32, #tpu.memory_space<vmem>>, vector<1x128xf32>
    %175 = vector.shape_cast %174 : vector<1x128xf32> to vector<128xf32>
    %c2_98 = arith.constant 2 : index
    %c0_99 = arith.constant 0 : index
    %176 = vector.load %arg4[%c2_98, %c0_99] : memref<4x128xf32, #tpu.memory_space<vmem>>, vector<1x128xf32>
    %177 = vector.shape_cast %176 : vector<1x128xf32> to vector<128xf32>
    %178 = arith.mulf %175, %177 : vector<128xf32>
    %c8_100 = arith.constant 8 : index
    %c0_101 = arith.constant 0 : index
    %179 = vector.load %arg3[%c8_100, %c0_101] : memref<24x128xf32, #tpu.memory_space<vmem>>, vector<1x128xf32>
    %180 = vector.shape_cast %179 : vector<1x128xf32> to vector<128xf32>
    %181 = arith.mulf %178, %180 : vector<128xf32>
    %c24 = arith.constant 24 : index
    %c0_102 = arith.constant 0 : index
    %182 = vector.load %arg6[%c24, %c0_102] : memref<64x128xf32, #tpu.memory_space<vmem>>, vector<1x128xf32>
    %183 = vector.shape_cast %182 : vector<1x128xf32> to vector<128xf32>
    %184 = vector.shape_cast %181 : vector<128xf32> to vector<1x128xf32>
    tpu.vector_store %arg6[%c24, %c0_102], %184 {strides = array<i32>} : memref<64x128xf32, #tpu.memory_space<vmem>>, vector<1x128xf32>,
    %c9_103 = arith.constant 9 : index
    %c0_104 = arith.constant 0 : index
    %185 = vector.load %arg3[%c9_103, %c0_104] : memref<24x128xf32, #tpu.memory_space<vmem>>, vector<1x128xf32>
    %186 = vector.shape_cast %185 : vector<1x128xf32> to vector<128xf32>
    %187 = arith.mulf %178, %186 : vector<128xf32>
    %c25 = arith.constant 25 : index
    %c0_105 = arith.constant 0 : index
    %188 = vector.load %arg6[%c25, %c0_105] : memref<64x128xf32, #tpu.memory_space<vmem>>, vector<1x128xf32>
    %189 = vector.shape_cast %188 : vector<1x128xf32> to vector<128xf32>
    %190 = vector.shape_cast %187 : vector<128xf32> to vector<1x128xf32>
    tpu.vector_store %arg6[%c25, %c0_105], %190 {strides = array<i32>} : memref<64x128xf32, #tpu.memory_space<vmem>>, vector<1x128xf32>,
    %c10_106 = arith.constant 10 : index
    %c0_107 = arith.constant 0 : index
    %191 = vector.load %arg3[%c10_106, %c0_107] : memref<24x128xf32, #tpu.memory_space<vmem>>, vector<1x128xf32>
    %192 = vector.shape_cast %191 : vector<1x128xf32> to vector<128xf32>
    %193 = arith.mulf %178, %192 : vector<128xf32>
    %c26 = arith.constant 26 : index
    %c0_108 = arith.constant 0 : index
    %194 = vector.load %arg6[%c26, %c0_108] : memref<64x128xf32, #tpu.memory_space<vmem>>, vector<1x128xf32>
    %195 = vector.shape_cast %194 : vector<1x128xf32> to vector<128xf32>
    %196 = vector.shape_cast %193 : vector<128xf32> to vector<1x128xf32>
    tpu.vector_store %arg6[%c26, %c0_108], %196 {strides = array<i32>} : memref<64x128xf32, #tpu.memory_space<vmem>>, vector<1x128xf32>,
    %c11_109 = arith.constant 11 : index
    %c0_110 = arith.constant 0 : index
    %197 = vector.load %arg3[%c11_109, %c0_110] : memref<24x128xf32, #tpu.memory_space<vmem>>, vector<1x128xf32>
    %198 = vector.shape_cast %197 : vector<1x128xf32> to vector<128xf32>
    %199 = arith.mulf %178, %198 : vector<128xf32>
    %c27 = arith.constant 27 : index
    %c0_111 = arith.constant 0 : index
    %200 = vector.load %arg6[%c27, %c0_111] : memref<64x128xf32, #tpu.memory_space<vmem>>, vector<1x128xf32>
    %201 = vector.shape_cast %200 : vector<1x128xf32> to vector<128xf32>
    %202 = vector.shape_cast %199 : vector<128xf32> to vector<1x128xf32>
    tpu.vector_store %arg6[%c27, %c0_111], %202 {strides = array<i32>} : memref<64x128xf32, #tpu.memory_space<vmem>>, vector<1x128xf32>,
    %c0_112 = arith.constant 0 : index
    %c0_113 = arith.constant 0 : index
    %203 = vector.load %arg2[%c0_112, %c0_113] : memref<9x128xf32, #tpu.memory_space<vmem>>, vector<1x128xf32>
    %204 = vector.shape_cast %203 : vector<1x128xf32> to vector<128xf32>
    %c3_114 = arith.constant 3 : index
    %c0_115 = arith.constant 0 : index
    %205 = vector.load %arg4[%c3_114, %c0_115] : memref<4x128xf32, #tpu.memory_space<vmem>>, vector<1x128xf32>
    %206 = vector.shape_cast %205 : vector<1x128xf32> to vector<128xf32>
    %207 = arith.mulf %204, %206 : vector<128xf32>
    %c12_116 = arith.constant 12 : index
    %c0_117 = arith.constant 0 : index
    %208 = vector.load %arg3[%c12_116, %c0_117] : memref<24x128xf32, #tpu.memory_space<vmem>>, vector<1x128xf32>
    %209 = vector.shape_cast %208 : vector<1x128xf32> to vector<128xf32>
    %210 = arith.mulf %207, %209 : vector<128xf32>
    %c28 = arith.constant 28 : index
    %c0_118 = arith.constant 0 : index
    %211 = vector.load %arg6[%c28, %c0_118] : memref<64x128xf32, #tpu.memory_space<vmem>>, vector<1x128xf32>
    %212 = vector.shape_cast %211 : vector<1x128xf32> to vector<128xf32>
    %213 = vector.shape_cast %210 : vector<128xf32> to vector<1x128xf32>
    tpu.vector_store %arg6[%c28, %c0_118], %213 {strides = array<i32>} : memref<64x128xf32, #tpu.memory_space<vmem>>, vector<1x128xf32>,
    %c15_119 = arith.constant 15 : index
    %c0_120 = arith.constant 0 : index
    %214 = vector.load %arg3[%c15_119, %c0_120] : memref<24x128xf32, #tpu.memory_space<vmem>>, vector<1x128xf32>
    %215 = vector.shape_cast %214 : vector<1x128xf32> to vector<128xf32>
    %216 = arith.mulf %207, %215 : vector<128xf32>
    %c29 = arith.constant 29 : index
    %c0_121 = arith.constant 0 : index
    %217 = vector.load %arg6[%c29, %c0_121] : memref<64x128xf32, #tpu.memory_space<vmem>>, vector<1x128xf32>
    %218 = vector.shape_cast %217 : vector<1x128xf32> to vector<128xf32>
    %219 = vector.shape_cast %216 : vector<128xf32> to vector<1x128xf32>
    tpu.vector_store %arg6[%c29, %c0_121], %219 {strides = array<i32>} : memref<64x128xf32, #tpu.memory_space<vmem>>, vector<1x128xf32>,
    %c18_122 = arith.constant 18 : index
    %c0_123 = arith.constant 0 : index
    %220 = vector.load %arg3[%c18_122, %c0_123] : memref<24x128xf32, #tpu.memory_space<vmem>>, vector<1x128xf32>
    %221 = vector.shape_cast %220 : vector<1x128xf32> to vector<128xf32>
    %222 = arith.mulf %207, %221 : vector<128xf32>
    %c30 = arith.constant 30 : index
    %c0_124 = arith.constant 0 : index
    %223 = vector.load %arg6[%c30, %c0_124] : memref<64x128xf32, #tpu.memory_space<vmem>>, vector<1x128xf32>
    %224 = vector.shape_cast %223 : vector<1x128xf32> to vector<128xf32>
    %225 = vector.shape_cast %222 : vector<128xf32> to vector<1x128xf32>
    tpu.vector_store %arg6[%c30, %c0_124], %225 {strides = array<i32>} : memref<64x128xf32, #tpu.memory_space<vmem>>, vector<1x128xf32>,
    %c21_125 = arith.constant 21 : index
    %c0_126 = arith.constant 0 : index
    %226 = vector.load %arg3[%c21_125, %c0_126] : memref<24x128xf32, #tpu.memory_space<vmem>>, vector<1x128xf32>
    %227 = vector.shape_cast %226 : vector<1x128xf32> to vector<128xf32>
    %228 = arith.mulf %207, %227 : vector<128xf32>
    %c31 = arith.constant 31 : index
    %c0_127 = arith.constant 0 : index
    %229 = vector.load %arg6[%c31, %c0_127] : memref<64x128xf32, #tpu.memory_space<vmem>>, vector<1x128xf32>
    %230 = vector.shape_cast %229 : vector<1x128xf32> to vector<128xf32>
    %231 = vector.shape_cast %228 : vector<128xf32> to vector<1x128xf32>
    tpu.vector_store %arg6[%c31, %c0_127], %231 {strides = array<i32>} : memref<64x128xf32, #tpu.memory_space<vmem>>, vector<1x128xf32>,
    %c1_128 = arith.constant 1 : index
    %c0_129 = arith.constant 0 : index
    %232 = vector.load %arg2[%c1_128, %c0_129] : memref<9x128xf32, #tpu.memory_space<vmem>>, vector<1x128xf32>
    %233 = vector.shape_cast %232 : vector<1x128xf32> to vector<128xf32>
    %c3_130 = arith.constant 3 : index
    %c0_131 = arith.constant 0 : index
    %234 = vector.load %arg4[%c3_130, %c0_131] : memref<4x128xf32, #tpu.memory_space<vmem>>, vector<1x128xf32>
    %235 = vector.shape_cast %234 : vector<1x128xf32> to vector<128xf32>
    %236 = arith.mulf %233, %235 : vector<128xf32>
    %c13_132 = arith.constant 13 : index
    %c0_133 = arith.constant 0 : index
    %237 = vector.load %arg3[%c13_132, %c0_133] : memref<24x128xf32, #tpu.memory_space<vmem>>, vector<1x128xf32>
    %238 = vector.shape_cast %237 : vector<1x128xf32> to vector<128xf32>
    %239 = arith.mulf %236, %238 : vector<128xf32>
    %c32 = arith.constant 32 : index
    %c0_134 = arith.constant 0 : index
    %240 = vector.load %arg6[%c32, %c0_134] : memref<64x128xf32, #tpu.memory_space<vmem>>, vector<1x128xf32>
    %241 = vector.shape_cast %240 : vector<1x128xf32> to vector<128xf32>
    %242 = vector.shape_cast %239 : vector<128xf32> to vector<1x128xf32>
    tpu.vector_store %arg6[%c32, %c0_134], %242 {strides = array<i32>} : memref<64x128xf32, #tpu.memory_space<vmem>>, vector<1x128xf32>,
    %c16_135 = arith.constant 16 : index
    %c0_136 = arith.constant 0 : index
    %243 = vector.load %arg3[%c16_135, %c0_136] : memref<24x128xf32, #tpu.memory_space<vmem>>, vector<1x128xf32>
    %244 = vector.shape_cast %243 : vector<1x128xf32> to vector<128xf32>
    %245 = arith.mulf %236, %244 : vector<128xf32>
    %c33 = arith.constant 33 : index
    %c0_137 = arith.constant 0 : index
    %246 = vector.load %arg6[%c33, %c0_137] : memref<64x128xf32, #tpu.memory_space<vmem>>, vector<1x128xf32>
    %247 = vector.shape_cast %246 : vector<1x128xf32> to vector<128xf32>
    %248 = vector.shape_cast %245 : vector<128xf32> to vector<1x128xf32>
    tpu.vector_store %arg6[%c33, %c0_137], %248 {strides = array<i32>} : memref<64x128xf32, #tpu.memory_space<vmem>>, vector<1x128xf32>,
    %c19_138 = arith.constant 19 : index
    %c0_139 = arith.constant 0 : index
    %249 = vector.load %arg3[%c19_138, %c0_139] : memref<24x128xf32, #tpu.memory_space<vmem>>, vector<1x128xf32>
    %250 = vector.shape_cast %249 : vector<1x128xf32> to vector<128xf32>
    %251 = arith.mulf %236, %250 : vector<128xf32>
    %c34 = arith.constant 34 : index
    %c0_140 = arith.constant 0 : index
    %252 = vector.load %arg6[%c34, %c0_140] : memref<64x128xf32, #tpu.memory_space<vmem>>, vector<1x128xf32>
    %253 = vector.shape_cast %252 : vector<1x128xf32> to vector<128xf32>
    %254 = vector.shape_cast %251 : vector<128xf32> to vector<1x128xf32>
    tpu.vector_store %arg6[%c34, %c0_140], %254 {strides = array<i32>} : memref<64x128xf32, #tpu.memory_space<vmem>>, vector<1x128xf32>,
    %c22_141 = arith.constant 22 : index
    %c0_142 = arith.constant 0 : index
    %255 = vector.load %arg3[%c22_141, %c0_142] : memref<24x128xf32, #tpu.memory_space<vmem>>, vector<1x128xf32>
    %256 = vector.shape_cast %255 : vector<1x128xf32> to vector<128xf32>
    %257 = arith.mulf %236, %256 : vector<128xf32>
    %c35 = arith.constant 35 : index
    %c0_143 = arith.constant 0 : index
    %258 = vector.load %arg6[%c35, %c0_143] : memref<64x128xf32, #tpu.memory_space<vmem>>, vector<1x128xf32>
    %259 = vector.shape_cast %258 : vector<1x128xf32> to vector<128xf32>
    %260 = vector.shape_cast %257 : vector<128xf32> to vector<1x128xf32>
    tpu.vector_store %arg6[%c35, %c0_143], %260 {strides = array<i32>} : memref<64x128xf32, #tpu.memory_space<vmem>>, vector<1x128xf32>,
    %c2_144 = arith.constant 2 : index
    %c0_145 = arith.constant 0 : index
    %261 = vector.load %arg2[%c2_144, %c0_145] : memref<9x128xf32, #tpu.memory_space<vmem>>, vector<1x128xf32>
    %262 = vector.shape_cast %261 : vector<1x128xf32> to vector<128xf32>
    %c3_146 = arith.constant 3 : index
    %c0_147 = arith.constant 0 : index
    %263 = vector.load %arg4[%c3_146, %c0_147] : memref<4x128xf32, #tpu.memory_space<vmem>>, vector<1x128xf32>
    %264 = vector.shape_cast %263 : vector<1x128xf32> to vector<128xf32>
    %265 = arith.mulf %262, %264 : vector<128xf32>
    %c13_148 = arith.constant 13 : index
    %c0_149 = arith.constant 0 : index
    %266 = vector.load %arg3[%c13_148, %c0_149] : memref<24x128xf32, #tpu.memory_space<vmem>>, vector<1x128xf32>
    %267 = vector.shape_cast %266 : vector<1x128xf32> to vector<128xf32>
    %268 = arith.mulf %265, %267 : vector<128xf32>
    %c36 = arith.constant 36 : index
    %c0_150 = arith.constant 0 : index
    %269 = vector.load %arg6[%c36, %c0_150] : memref<64x128xf32, #tpu.memory_space<vmem>>, vector<1x128xf32>
    %270 = vector.shape_cast %269 : vector<1x128xf32> to vector<128xf32>
    %271 = vector.shape_cast %268 : vector<128xf32> to vector<1x128xf32>
    tpu.vector_store %arg6[%c36, %c0_150], %271 {strides = array<i32>} : memref<64x128xf32, #tpu.memory_space<vmem>>, vector<1x128xf32>,
    %c16_151 = arith.constant 16 : index
    %c0_152 = arith.constant 0 : index
    %272 = vector.load %arg3[%c16_151, %c0_152] : memref<24x128xf32, #tpu.memory_space<vmem>>, vector<1x128xf32>
    %273 = vector.shape_cast %272 : vector<1x128xf32> to vector<128xf32>
    %274 = arith.mulf %265, %273 : vector<128xf32>
    %c37 = arith.constant 37 : index
    %c0_153 = arith.constant 0 : index
    %275 = vector.load %arg6[%c37, %c0_153] : memref<64x128xf32, #tpu.memory_space<vmem>>, vector<1x128xf32>
    %276 = vector.shape_cast %275 : vector<1x128xf32> to vector<128xf32>
    %277 = vector.shape_cast %274 : vector<128xf32> to vector<1x128xf32>
    tpu.vector_store %arg6[%c37, %c0_153], %277 {strides = array<i32>} : memref<64x128xf32, #tpu.memory_space<vmem>>, vector<1x128xf32>,
    %c19_154 = arith.constant 19 : index
    %c0_155 = arith.constant 0 : index
    %278 = vector.load %arg3[%c19_154, %c0_155] : memref<24x128xf32, #tpu.memory_space<vmem>>, vector<1x128xf32>
    %279 = vector.shape_cast %278 : vector<1x128xf32> to vector<128xf32>
    %280 = arith.mulf %265, %279 : vector<128xf32>
    %c38 = arith.constant 38 : index
    %c0_156 = arith.constant 0 : index
    %281 = vector.load %arg6[%c38, %c0_156] : memref<64x128xf32, #tpu.memory_space<vmem>>, vector<1x128xf32>
    %282 = vector.shape_cast %281 : vector<1x128xf32> to vector<128xf32>
    %283 = vector.shape_cast %280 : vector<128xf32> to vector<1x128xf32>
    tpu.vector_store %arg6[%c38, %c0_156], %283 {strides = array<i32>} : memref<64x128xf32, #tpu.memory_space<vmem>>, vector<1x128xf32>,
    %c22_157 = arith.constant 22 : index
    %c0_158 = arith.constant 0 : index
    %284 = vector.load %arg3[%c22_157, %c0_158] : memref<24x128xf32, #tpu.memory_space<vmem>>, vector<1x128xf32>
    %285 = vector.shape_cast %284 : vector<1x128xf32> to vector<128xf32>
    %286 = arith.mulf %265, %285 : vector<128xf32>
    %c39 = arith.constant 39 : index
    %c0_159 = arith.constant 0 : index
    %287 = vector.load %arg6[%c39, %c0_159] : memref<64x128xf32, #tpu.memory_space<vmem>>, vector<1x128xf32>
    %288 = vector.shape_cast %287 : vector<1x128xf32> to vector<128xf32>
    %289 = vector.shape_cast %286 : vector<128xf32> to vector<1x128xf32>
    tpu.vector_store %arg6[%c39, %c0_159], %289 {strides = array<i32>} : memref<64x128xf32, #tpu.memory_space<vmem>>, vector<1x128xf32>,
    %c3_160 = arith.constant 3 : index
    %c0_161 = arith.constant 0 : index
    %290 = vector.load %arg2[%c3_160, %c0_161] : memref<9x128xf32, #tpu.memory_space<vmem>>, vector<1x128xf32>
    %291 = vector.shape_cast %290 : vector<1x128xf32> to vector<128xf32>
    %c3_162 = arith.constant 3 : index
    %c0_163 = arith.constant 0 : index
    %292 = vector.load %arg4[%c3_162, %c0_163] : memref<4x128xf32, #tpu.memory_space<vmem>>, vector<1x128xf32>
    %293 = vector.shape_cast %292 : vector<1x128xf32> to vector<128xf32>
    %294 = arith.mulf %291, %293 : vector<128xf32>
    %c13_164 = arith.constant 13 : index
    %c0_165 = arith.constant 0 : index
    %295 = vector.load %arg3[%c13_164, %c0_165] : memref<24x128xf32, #tpu.memory_space<vmem>>, vector<1x128xf32>
    %296 = vector.shape_cast %295 : vector<1x128xf32> to vector<128xf32>
    %297 = arith.mulf %294, %296 : vector<128xf32>
    %c40 = arith.constant 40 : index
    %c0_166 = arith.constant 0 : index
    %298 = vector.load %arg6[%c40, %c0_166] : memref<64x128xf32, #tpu.memory_space<vmem>>, vector<1x128xf32>
    %299 = vector.shape_cast %298 : vector<1x128xf32> to vector<128xf32>
    %300 = vector.shape_cast %297 : vector<128xf32> to vector<1x128xf32>
    tpu.vector_store %arg6[%c40, %c0_166], %300 {strides = array<i32>} : memref<64x128xf32, #tpu.memory_space<vmem>>, vector<1x128xf32>,
    %c16_167 = arith.constant 16 : index
    %c0_168 = arith.constant 0 : index
    %301 = vector.load %arg3[%c16_167, %c0_168] : memref<24x128xf32, #tpu.memory_space<vmem>>, vector<1x128xf32>
    %302 = vector.shape_cast %301 : vector<1x128xf32> to vector<128xf32>
    %303 = arith.mulf %294, %302 : vector<128xf32>
    %c41 = arith.constant 41 : index
    %c0_169 = arith.constant 0 : index
    %304 = vector.load %arg6[%c41, %c0_169] : memref<64x128xf32, #tpu.memory_space<vmem>>, vector<1x128xf32>
    %305 = vector.shape_cast %304 : vector<1x128xf32> to vector<128xf32>
    %306 = vector.shape_cast %303 : vector<128xf32> to vector<1x128xf32>
    tpu.vector_store %arg6[%c41, %c0_169], %306 {strides = array<i32>} : memref<64x128xf32, #tpu.memory_space<vmem>>, vector<1x128xf32>,
    %c19_170 = arith.constant 19 : index
    %c0_171 = arith.constant 0 : index
    %307 = vector.load %arg3[%c19_170, %c0_171] : memref<24x128xf32, #tpu.memory_space<vmem>>, vector<1x128xf32>
    %308 = vector.shape_cast %307 : vector<1x128xf32> to vector<128xf32>
    %309 = arith.mulf %294, %308 : vector<128xf32>
    %c42 = arith.constant 42 : index
    %c0_172 = arith.constant 0 : index
    %310 = vector.load %arg6[%c42, %c0_172] : memref<64x128xf32, #tpu.memory_space<vmem>>, vector<1x128xf32>
    %311 = vector.shape_cast %310 : vector<1x128xf32> to vector<128xf32>
    %312 = vector.shape_cast %309 : vector<128xf32> to vector<1x128xf32>
    tpu.vector_store %arg6[%c42, %c0_172], %312 {strides = array<i32>} : memref<64x128xf32, #tpu.memory_space<vmem>>, vector<1x128xf32>,
    %c22_173 = arith.constant 22 : index
    %c0_174 = arith.constant 0 : index
    %313 = vector.load %arg3[%c22_173, %c0_174] : memref<24x128xf32, #tpu.memory_space<vmem>>, vector<1x128xf32>
    %314 = vector.shape_cast %313 : vector<1x128xf32> to vector<128xf32>
    %315 = arith.mulf %294, %314 : vector<128xf32>
    %c43 = arith.constant 43 : index
    %c0_175 = arith.constant 0 : index
    %316 = vector.load %arg6[%c43, %c0_175] : memref<64x128xf32, #tpu.memory_space<vmem>>, vector<1x128xf32>
    %317 = vector.shape_cast %316 : vector<1x128xf32> to vector<128xf32>
    %318 = vector.shape_cast %315 : vector<128xf32> to vector<1x128xf32>
    tpu.vector_store %arg6[%c43, %c0_175], %318 {strides = array<i32>} : memref<64x128xf32, #tpu.memory_space<vmem>>, vector<1x128xf32>,
    %c4_176 = arith.constant 4 : index
    %c0_177 = arith.constant 0 : index
    %319 = vector.load %arg2[%c4_176, %c0_177] : memref<9x128xf32, #tpu.memory_space<vmem>>, vector<1x128xf32>
    %320 = vector.shape_cast %319 : vector<1x128xf32> to vector<128xf32>
    %c3_178 = arith.constant 3 : index
    %c0_179 = arith.constant 0 : index
    %321 = vector.load %arg4[%c3_178, %c0_179] : memref<4x128xf32, #tpu.memory_space<vmem>>, vector<1x128xf32>
    %322 = vector.shape_cast %321 : vector<1x128xf32> to vector<128xf32>
    %323 = arith.mulf %320, %322 : vector<128xf32>
    %c14_180 = arith.constant 14 : index
    %c0_181 = arith.constant 0 : index
    %324 = vector.load %arg3[%c14_180, %c0_181] : memref<24x128xf32, #tpu.memory_space<vmem>>, vector<1x128xf32>
    %325 = vector.shape_cast %324 : vector<1x128xf32> to vector<128xf32>
    %326 = arith.mulf %323, %325 : vector<128xf32>
    %c44 = arith.constant 44 : index
    %c0_182 = arith.constant 0 : index
    %327 = vector.load %arg6[%c44, %c0_182] : memref<64x128xf32, #tpu.memory_space<vmem>>, vector<1x128xf32>
    %328 = vector.shape_cast %327 : vector<1x128xf32> to vector<128xf32>
    %329 = vector.shape_cast %326 : vector<128xf32> to vector<1x128xf32>
    tpu.vector_store %arg6[%c44, %c0_182], %329 {strides = array<i32>} : memref<64x128xf32, #tpu.memory_space<vmem>>, vector<1x128xf32>,
    %c17_183 = arith.constant 17 : index
    %c0_184 = arith.constant 0 : index
    %330 = vector.load %arg3[%c17_183, %c0_184] : memref<24x128xf32, #tpu.memory_space<vmem>>, vector<1x128xf32>
    %331 = vector.shape_cast %330 : vector<1x128xf32> to vector<128xf32>
    %332 = arith.mulf %323, %331 : vector<128xf32>
    %c45 = arith.constant 45 : index
    %c0_185 = arith.constant 0 : index
    %333 = vector.load %arg6[%c45, %c0_185] : memref<64x128xf32, #tpu.memory_space<vmem>>, vector<1x128xf32>
    %334 = vector.shape_cast %333 : vector<1x128xf32> to vector<128xf32>
    %335 = vector.shape_cast %332 : vector<128xf32> to vector<1x128xf32>
    tpu.vector_store %arg6[%c45, %c0_185], %335 {strides = array<i32>} : memref<64x128xf32, #tpu.memory_space<vmem>>, vector<1x128xf32>,
    %c20_186 = arith.constant 20 : index
    %c0_187 = arith.constant 0 : index
    %336 = vector.load %arg3[%c20_186, %c0_187] : memref<24x128xf32, #tpu.memory_space<vmem>>, vector<1x128xf32>
    %337 = vector.shape_cast %336 : vector<1x128xf32> to vector<128xf32>
    %338 = arith.mulf %323, %337 : vector<128xf32>
    %c46 = arith.constant 46 : index
    %c0_188 = arith.constant 0 : index
    %339 = vector.load %arg6[%c46, %c0_188] : memref<64x128xf32, #tpu.memory_space<vmem>>, vector<1x128xf32>
    %340 = vector.shape_cast %339 : vector<1x128xf32> to vector<128xf32>
    %341 = vector.shape_cast %338 : vector<128xf32> to vector<1x128xf32>
    tpu.vector_store %arg6[%c46, %c0_188], %341 {strides = array<i32>} : memref<64x128xf32, #tpu.memory_space<vmem>>, vector<1x128xf32>,
    %c23_189 = arith.constant 23 : index
    %c0_190 = arith.constant 0 : index
    %342 = vector.load %arg3[%c23_189, %c0_190] : memref<24x128xf32, #tpu.memory_space<vmem>>, vector<1x128xf32>
    %343 = vector.shape_cast %342 : vector<1x128xf32> to vector<128xf32>
    %344 = arith.mulf %323, %343 : vector<128xf32>
    %c47 = arith.constant 47 : index
    %c0_191 = arith.constant 0 : index
    %345 = vector.load %arg6[%c47, %c0_191] : memref<64x128xf32, #tpu.memory_space<vmem>>, vector<1x128xf32>
    %346 = vector.shape_cast %345 : vector<1x128xf32> to vector<128xf32>
    %347 = vector.shape_cast %344 : vector<128xf32> to vector<1x128xf32>
    tpu.vector_store %arg6[%c47, %c0_191], %347 {strides = array<i32>} : memref<64x128xf32, #tpu.memory_space<vmem>>, vector<1x128xf32>,
    %c5_192 = arith.constant 5 : index
    %c0_193 = arith.constant 0 : index
    %348 = vector.load %arg2[%c5_192, %c0_193] : memref<9x128xf32, #tpu.memory_space<vmem>>, vector<1x128xf32>
    %349 = vector.shape_cast %348 : vector<1x128xf32> to vector<128xf32>
    %c3_194 = arith.constant 3 : index
    %c0_195 = arith.constant 0 : index
    %350 = vector.load %arg4[%c3_194, %c0_195] : memref<4x128xf32, #tpu.memory_space<vmem>>, vector<1x128xf32>
    %351 = vector.shape_cast %350 : vector<1x128xf32> to vector<128xf32>
    %352 = arith.mulf %349, %351 : vector<128xf32>
    %c14_196 = arith.constant 14 : index
    %c0_197 = arith.constant 0 : index
    %353 = vector.load %arg3[%c14_196, %c0_197] : memref<24x128xf32, #tpu.memory_space<vmem>>, vector<1x128xf32>
    %354 = vector.shape_cast %353 : vector<1x128xf32> to vector<128xf32>
    %355 = arith.mulf %352, %354 : vector<128xf32>
    %c48 = arith.constant 48 : index
    %c0_198 = arith.constant 0 : index
    %356 = vector.load %arg6[%c48, %c0_198] : memref<64x128xf32, #tpu.memory_space<vmem>>, vector<1x128xf32>
    %357 = vector.shape_cast %356 : vector<1x128xf32> to vector<128xf32>
    %358 = vector.shape_cast %355 : vector<128xf32> to vector<1x128xf32>
    tpu.vector_store %arg6[%c48, %c0_198], %358 {strides = array<i32>} : memref<64x128xf32, #tpu.memory_space<vmem>>, vector<1x128xf32>,
    %c17_199 = arith.constant 17 : index
    %c0_200 = arith.constant 0 : index
    %359 = vector.load %arg3[%c17_199, %c0_200] : memref<24x128xf32, #tpu.memory_space<vmem>>, vector<1x128xf32>
    %360 = vector.shape_cast %359 : vector<1x128xf32> to vector<128xf32>
    %361 = arith.mulf %352, %360 : vector<128xf32>
    %c49 = arith.constant 49 : index
    %c0_201 = arith.constant 0 : index
    %362 = vector.load %arg6[%c49, %c0_201] : memref<64x128xf32, #tpu.memory_space<vmem>>, vector<1x128xf32>
    %363 = vector.shape_cast %362 : vector<1x128xf32> to vector<128xf32>
    %364 = vector.shape_cast %361 : vector<128xf32> to vector<1x128xf32>
    tpu.vector_store %arg6[%c49, %c0_201], %364 {strides = array<i32>} : memref<64x128xf32, #tpu.memory_space<vmem>>, vector<1x128xf32>,
    %c20_202 = arith.constant 20 : index
    %c0_203 = arith.constant 0 : index
    %365 = vector.load %arg3[%c20_202, %c0_203] : memref<24x128xf32, #tpu.memory_space<vmem>>, vector<1x128xf32>
    %366 = vector.shape_cast %365 : vector<1x128xf32> to vector<128xf32>
    %367 = arith.mulf %352, %366 : vector<128xf32>
    %c50 = arith.constant 50 : index
    %c0_204 = arith.constant 0 : index
    %368 = vector.load %arg6[%c50, %c0_204] : memref<64x128xf32, #tpu.memory_space<vmem>>, vector<1x128xf32>
    %369 = vector.shape_cast %368 : vector<1x128xf32> to vector<128xf32>
    %370 = vector.shape_cast %367 : vector<128xf32> to vector<1x128xf32>
    tpu.vector_store %arg6[%c50, %c0_204], %370 {strides = array<i32>} : memref<64x128xf32, #tpu.memory_space<vmem>>, vector<1x128xf32>,
    %c23_205 = arith.constant 23 : index
    %c0_206 = arith.constant 0 : index
    %371 = vector.load %arg3[%c23_205, %c0_206] : memref<24x128xf32, #tpu.memory_space<vmem>>, vector<1x128xf32>
    %372 = vector.shape_cast %371 : vector<1x128xf32> to vector<128xf32>
    %373 = arith.mulf %352, %372 : vector<128xf32>
    %c51 = arith.constant 51 : index
    %c0_207 = arith.constant 0 : index
    %374 = vector.load %arg6[%c51, %c0_207] : memref<64x128xf32, #tpu.memory_space<vmem>>, vector<1x128xf32>
    %375 = vector.shape_cast %374 : vector<1x128xf32> to vector<128xf32>
    %376 = vector.shape_cast %373 : vector<128xf32> to vector<1x128xf32>
    tpu.vector_store %arg6[%c51, %c0_207], %376 {strides = array<i32>} : memref<64x128xf32, #tpu.memory_space<vmem>>, vector<1x128xf32>,
    %c6_208 = arith.constant 6 : index
    %c0_209 = arith.constant 0 : index
    %377 = vector.load %arg2[%c6_208, %c0_209] : memref<9x128xf32, #tpu.memory_space<vmem>>, vector<1x128xf32>
    %378 = vector.shape_cast %377 : vector<1x128xf32> to vector<128xf32>
    %c3_210 = arith.constant 3 : index
    %c0_211 = arith.constant 0 : index
    %379 = vector.load %arg4[%c3_210, %c0_211] : memref<4x128xf32, #tpu.memory_space<vmem>>, vector<1x128xf32>
    %380 = vector.shape_cast %379 : vector<1x128xf32> to vector<128xf32>
    %381 = arith.mulf %378, %380 : vector<128xf32>
    %c14_212 = arith.constant 14 : index
    %c0_213 = arith.constant 0 : index
    %382 = vector.load %arg3[%c14_212, %c0_213] : memref<24x128xf32, #tpu.memory_space<vmem>>, vector<1x128xf32>
    %383 = vector.shape_cast %382 : vector<1x128xf32> to vector<128xf32>
    %384 = arith.mulf %381, %383 : vector<128xf32>
    %c52 = arith.constant 52 : index
    %c0_214 = arith.constant 0 : index
    %385 = vector.load %arg6[%c52, %c0_214] : memref<64x128xf32, #tpu.memory_space<vmem>>, vector<1x128xf32>
    %386 = vector.shape_cast %385 : vector<1x128xf32> to vector<128xf32>
    %387 = vector.shape_cast %384 : vector<128xf32> to vector<1x128xf32>
    tpu.vector_store %arg6[%c52, %c0_214], %387 {strides = array<i32>} : memref<64x128xf32, #tpu.memory_space<vmem>>, vector<1x128xf32>,
    %c17_215 = arith.constant 17 : index
    %c0_216 = arith.constant 0 : index
    %388 = vector.load %arg3[%c17_215, %c0_216] : memref<24x128xf32, #tpu.memory_space<vmem>>, vector<1x128xf32>
    %389 = vector.shape_cast %388 : vector<1x128xf32> to vector<128xf32>
    %390 = arith.mulf %381, %389 : vector<128xf32>
    %c53 = arith.constant 53 : index
    %c0_217 = arith.constant 0 : index
    %391 = vector.load %arg6[%c53, %c0_217] : memref<64x128xf32, #tpu.memory_space<vmem>>, vector<1x128xf32>
    %392 = vector.shape_cast %391 : vector<1x128xf32> to vector<128xf32>
    %393 = vector.shape_cast %390 : vector<128xf32> to vector<1x128xf32>
    tpu.vector_store %arg6[%c53, %c0_217], %393 {strides = array<i32>} : memref<64x128xf32, #tpu.memory_space<vmem>>, vector<1x128xf32>,
    %c20_218 = arith.constant 20 : index
    %c0_219 = arith.constant 0 : index
    %394 = vector.load %arg3[%c20_218, %c0_219] : memref<24x128xf32, #tpu.memory_space<vmem>>, vector<1x128xf32>
    %395 = vector.shape_cast %394 : vector<1x128xf32> to vector<128xf32>
    %396 = arith.mulf %381, %395 : vector<128xf32>
    %c54 = arith.constant 54 : index
    %c0_220 = arith.constant 0 : index
    %397 = vector.load %arg6[%c54, %c0_220] : memref<64x128xf32, #tpu.memory_space<vmem>>, vector<1x128xf32>
    %398 = vector.shape_cast %397 : vector<1x128xf32> to vector<128xf32>
    %399 = vector.shape_cast %396 : vector<128xf32> to vector<1x128xf32>
    tpu.vector_store %arg6[%c54, %c0_220], %399 {strides = array<i32>} : memref<64x128xf32, #tpu.memory_space<vmem>>, vector<1x128xf32>,
    %c23_221 = arith.constant 23 : index
    %c0_222 = arith.constant 0 : index
    %400 = vector.load %arg3[%c23_221, %c0_222] : memref<24x128xf32, #tpu.memory_space<vmem>>, vector<1x128xf32>
    %401 = vector.shape_cast %400 : vector<1x128xf32> to vector<128xf32>
    %402 = arith.mulf %381, %401 : vector<128xf32>
    %c55 = arith.constant 55 : index
    %c0_223 = arith.constant 0 : index
    %403 = vector.load %arg6[%c55, %c0_223] : memref<64x128xf32, #tpu.memory_space<vmem>>, vector<1x128xf32>
    %404 = vector.shape_cast %403 : vector<1x128xf32> to vector<128xf32>
    %405 = vector.shape_cast %402 : vector<128xf32> to vector<1x128xf32>
    tpu.vector_store %arg6[%c55, %c0_223], %405 {strides = array<i32>} : memref<64x128xf32, #tpu.memory_space<vmem>>, vector<1x128xf32>,
    %c7_224 = arith.constant 7 : index
    %c0_225 = arith.constant 0 : index
    %406 = vector.load %arg2[%c7_224, %c0_225] : memref<9x128xf32, #tpu.memory_space<vmem>>, vector<1x128xf32>
    %407 = vector.shape_cast %406 : vector<1x128xf32> to vector<128xf32>
    %c3_226 = arith.constant 3 : index
    %c0_227 = arith.constant 0 : index
    %408 = vector.load %arg4[%c3_226, %c0_227] : memref<4x128xf32, #tpu.memory_space<vmem>>, vector<1x128xf32>
    %409 = vector.shape_cast %408 : vector<1x128xf32> to vector<128xf32>
    %410 = arith.mulf %407, %409 : vector<128xf32>
    %c14_228 = arith.constant 14 : index
    %c0_229 = arith.constant 0 : index
    %411 = vector.load %arg3[%c14_228, %c0_229] : memref<24x128xf32, #tpu.memory_space<vmem>>, vector<1x128xf32>
    %412 = vector.shape_cast %411 : vector<1x128xf32> to vector<128xf32>
    %413 = arith.mulf %410, %412 : vector<128xf32>
    %c56 = arith.constant 56 : index
    %c0_230 = arith.constant 0 : index
    %414 = vector.load %arg6[%c56, %c0_230] : memref<64x128xf32, #tpu.memory_space<vmem>>, vector<1x128xf32>
    %415 = vector.shape_cast %414 : vector<1x128xf32> to vector<128xf32>
    %416 = vector.shape_cast %413 : vector<128xf32> to vector<1x128xf32>
    tpu.vector_store %arg6[%c56, %c0_230], %416 {strides = array<i32>} : memref<64x128xf32, #tpu.memory_space<vmem>>, vector<1x128xf32>,
    %c17_231 = arith.constant 17 : index
    %c0_232 = arith.constant 0 : index
    %417 = vector.load %arg3[%c17_231, %c0_232] : memref<24x128xf32, #tpu.memory_space<vmem>>, vector<1x128xf32>
    %418 = vector.shape_cast %417 : vector<1x128xf32> to vector<128xf32>
    %419 = arith.mulf %410, %418 : vector<128xf32>
    %c57 = arith.constant 57 : index
    %c0_233 = arith.constant 0 : index
    %420 = vector.load %arg6[%c57, %c0_233] : memref<64x128xf32, #tpu.memory_space<vmem>>, vector<1x128xf32>
    %421 = vector.shape_cast %420 : vector<1x128xf32> to vector<128xf32>
    %422 = vector.shape_cast %419 : vector<128xf32> to vector<1x128xf32>
    tpu.vector_store %arg6[%c57, %c0_233], %422 {strides = array<i32>} : memref<64x128xf32, #tpu.memory_space<vmem>>, vector<1x128xf32>,
    %c20_234 = arith.constant 20 : index
    %c0_235 = arith.constant 0 : index
    %423 = vector.load %arg3[%c20_234, %c0_235] : memref<24x128xf32, #tpu.memory_space<vmem>>, vector<1x128xf32>
    %424 = vector.shape_cast %423 : vector<1x128xf32> to vector<128xf32>
    %425 = arith.mulf %410, %424 : vector<128xf32>
    %c58 = arith.constant 58 : index
    %c0_236 = arith.constant 0 : index
    %426 = vector.load %arg6[%c58, %c0_236] : memref<64x128xf32, #tpu.memory_space<vmem>>, vector<1x128xf32>
    %427 = vector.shape_cast %426 : vector<1x128xf32> to vector<128xf32>
    %428 = vector.shape_cast %425 : vector<128xf32> to vector<1x128xf32>
    tpu.vector_store %arg6[%c58, %c0_236], %428 {strides = array<i32>} : memref<64x128xf32, #tpu.memory_space<vmem>>, vector<1x128xf32>,
    %c23_237 = arith.constant 23 : index
    %c0_238 = arith.constant 0 : index
    %429 = vector.load %arg3[%c23_237, %c0_238] : memref<24x128xf32, #tpu.memory_space<vmem>>, vector<1x128xf32>
    %430 = vector.shape_cast %429 : vector<1x128xf32> to vector<128xf32>
    %431 = arith.mulf %410, %430 : vector<128xf32>
    %c59 = arith.constant 59 : index
    %c0_239 = arith.constant 0 : index
    %432 = vector.load %arg6[%c59, %c0_239] : memref<64x128xf32, #tpu.memory_space<vmem>>, vector<1x128xf32>
    %433 = vector.shape_cast %432 : vector<1x128xf32> to vector<128xf32>
    %434 = vector.shape_cast %431 : vector<128xf32> to vector<1x128xf32>
    tpu.vector_store %arg6[%c59, %c0_239], %434 {strides = array<i32>} : memref<64x128xf32, #tpu.memory_space<vmem>>, vector<1x128xf32>,
    %c8_240 = arith.constant 8 : index
    %c0_241 = arith.constant 0 : index
    %435 = vector.load %arg2[%c8_240, %c0_241] : memref<9x128xf32, #tpu.memory_space<vmem>>, vector<1x128xf32>
    %436 = vector.shape_cast %435 : vector<1x128xf32> to vector<128xf32>
    %c3_242 = arith.constant 3 : index
    %c0_243 = arith.constant 0 : index
    %437 = vector.load %arg4[%c3_242, %c0_243] : memref<4x128xf32, #tpu.memory_space<vmem>>, vector<1x128xf32>
    %438 = vector.shape_cast %437 : vector<1x128xf32> to vector<128xf32>
    %439 = arith.mulf %436, %438 : vector<128xf32>
    %c14_244 = arith.constant 14 : index
    %c0_245 = arith.constant 0 : index
    %440 = vector.load %arg3[%c14_244, %c0_245] : memref<24x128xf32, #tpu.memory_space<vmem>>, vector<1x128xf32>
    %441 = vector.shape_cast %440 : vector<1x128xf32> to vector<128xf32>
    %442 = arith.mulf %439, %441 : vector<128xf32>
    %c60 = arith.constant 60 : index
    %c0_246 = arith.constant 0 : index
    %443 = vector.load %arg6[%c60, %c0_246] : memref<64x128xf32, #tpu.memory_space<vmem>>, vector<1x128xf32>
    %444 = vector.shape_cast %443 : vector<1x128xf32> to vector<128xf32>
    %445 = vector.shape_cast %442 : vector<128xf32> to vector<1x128xf32>
    tpu.vector_store %arg6[%c60, %c0_246], %445 {strides = array<i32>} : memref<64x128xf32, #tpu.memory_space<vmem>>, vector<1x128xf32>,
    %c17_247 = arith.constant 17 : index
    %c0_248 = arith.constant 0 : index
    %446 = vector.load %arg3[%c17_247, %c0_248] : memref<24x128xf32, #tpu.memory_space<vmem>>, vector<1x128xf32>
    %447 = vector.shape_cast %446 : vector<1x128xf32> to vector<128xf32>
    %448 = arith.mulf %439, %447 : vector<128xf32>
    %c61 = arith.constant 61 : index
    %c0_249 = arith.constant 0 : index
    %449 = vector.load %arg6[%c61, %c0_249] : memref<64x128xf32, #tpu.memory_space<vmem>>, vector<1x128xf32>
    %450 = vector.shape_cast %449 : vector<1x128xf32> to vector<128xf32>
    %451 = vector.shape_cast %448 : vector<128xf32> to vector<1x128xf32>
    tpu.vector_store %arg6[%c61, %c0_249], %451 {strides = array<i32>} : memref<64x128xf32, #tpu.memory_space<vmem>>, vector<1x128xf32>,
    %c20_250 = arith.constant 20 : index
    %c0_251 = arith.constant 0 : index
    %452 = vector.load %arg3[%c20_250, %c0_251] : memref<24x128xf32, #tpu.memory_space<vmem>>, vector<1x128xf32>
    %453 = vector.shape_cast %452 : vector<1x128xf32> to vector<128xf32>
    %454 = arith.mulf %439, %453 : vector<128xf32>
    %c62 = arith.constant 62 : index
    %c0_252 = arith.constant 0 : index
    %455 = vector.load %arg6[%c62, %c0_252] : memref<64x128xf32, #tpu.memory_space<vmem>>, vector<1x128xf32>
    %456 = vector.shape_cast %455 : vector<1x128xf32> to vector<128xf32>
    %457 = vector.shape_cast %454 : vector<128xf32> to vector<1x128xf32>
    tpu.vector_store %arg6[%c62, %c0_252], %457 {strides = array<i32>} : memref<64x128xf32, #tpu.memory_space<vmem>>, vector<1x128xf32>,
    %c23_253 = arith.constant 23 : index
    %c0_254 = arith.constant 0 : index
    %458 = vector.load %arg3[%c23_253, %c0_254] : memref<24x128xf32, #tpu.memory_space<vmem>>, vector<1x128xf32>
    %459 = vector.shape_cast %458 : vector<1x128xf32> to vector<128xf32>
    %460 = arith.mulf %439, %459 : vector<128xf32>
    %c63 = arith.constant 63 : index
    %c0_255 = arith.constant 0 : index
    %461 = vector.load %arg6[%c63, %c0_255] : memref<64x128xf32, #tpu.memory_space<vmem>>, vector<1x128xf32>
    %462 = vector.shape_cast %461 : vector<1x128xf32> to vector<128xf32>
    %463 = vector.shape_cast %460 : vector<128xf32> to vector<1x128xf32>
    tpu.vector_store %arg6[%c63, %c0_255], %463 {strides = array<i32>} : memref<64x128xf32, #tpu.memory_space<vmem>>, vector<1x128xf32>,
    %c0_256 = arith.constant 0 : index
    %c0_257 = arith.constant 0 : index
    %464 = vector.load %arg1[%c0_256, %c0_257] : memref<128x64xf32, #tpu.memory_space<vmem>>, vector<128x64xf32>
    %c0_258 = arith.constant 0 : index
    %c0_259 = arith.constant 0 : index
    %465 = vector.load %arg6[%c0_258, %c0_259] : memref<64x128xf32, #tpu.memory_space<vmem>>, vector<64x128xf32>
    %cst = arith.constant dense<0.000000e+00> : vector<128x128xf32>
    %466 = tpu.matmul %464, %465, %cst {dimension_numbers = #tpu.dot_dimension_numbers<[1], [0], [0], [1], [0, 0, 1, 1], [], []>} : vector<128x64xf32>, vector<64x128xf32>, vector<128x128xf32> -> vector<128x128xf32>
    %467 = tpu.transpose %466, [1, 0] : vector<128x128xf32> -> vector<128x128xf32>
    %468 = vector.extract_strided_slice %467 {offsets = [0, 0], sizes = [128, 64], strides = [1, 1]} : vector<128x128xf32> to vector<128x64xf32>
    %c0_260 = arith.constant 0 : index
    %c0_261 = arith.constant 0 : index
    %469 = vector.load %arg5[%c0_260, %c0_261] : memref<128x64xf32, #tpu.memory_space<vmem>>, vector<128x64xf32>
    tpu.vector_store %arg5[%c0_260, %c0_261], %468 {strides = array<i32>} : memref<128x64xf32, #tpu.memory_space<vmem>>, vector<128x64xf32>,
    return
  }
  func.func @transform_0(%arg0: i32) -> (i32, i32) {
    %c0_i32 = arith.constant 0 : i32
    %c0_i32_0 = arith.constant 0 : i32
    %c0_i32_1 = arith.constant 0 : i32
    return %c0_i32, %c0_i32_0 : i32, i32
  }
  func.func @transform_1(%arg0: i32) -> (i32, i32) {
    %c0_i32 = arith.constant 0 : i32
    %c0_i32_0 = arith.constant 0 : i32
    return %c0_i32, %arg0 : i32, i32
  }
  func.func @transform_2(%arg0: i32) -> (i32, i32) {
    %c0_i32 = arith.constant 0 : i32
    %c0_i32_0 = arith.constant 0 : i32
    return %c0_i32, %arg0 : i32, i32
  }
  func.func @transform_3(%arg0: i32) -> (i32, i32) {
    %c0_i32 = arith.constant 0 : i32
    %c0_i32_0 = arith.constant 0 : i32
    return %c0_i32, %arg0 : i32, i32
  }
  func.func @transform_4(%arg0: i32) -> (i32, i32) {
    %c0_i32 = arith.constant 0 : i32
    %c0_i32_0 = arith.constant 0 : i32
    return %arg0, %c0_i32 : i32, i32
  }
}

</mosaic_0001>

<llo_original>
// kernel: tpu_custom_call.1
$region0: #{tpu_custom_call.1}
  #allocation0 [shape = 'u32[]', space=smem, size = 0x4, offset = 0x4, fixed_abs, tag = 'smem constant byte address 0x4 - core index']
  #allocation1 [shape = 'u32[144,128]{1,0:T(1,128)}', space=vmem, size = 0x12000, scoped, tag = 'internal scratch']
  #allocation2 [shape = 'f32[64,128]{1,0:T(8,128)}', space=vmem, size = 0x8000, scoped, tag = 'scratch operand']
  %s0 = inlined_call_operand.vmem [shape: f32[128,64], index: 0, kind: input, shape index: {}]
  %s1 = inlined_call_operand.vmem [shape: f32[9,128], index: 1, kind: input, shape index: {}]
  %s2 = inlined_call_operand.vmem [shape: f32[24,128], index: 2, kind: input, shape index: {}]
  %s3 = inlined_call_operand.vmem [shape: f32[4,128], index: 3, kind: input, shape index: {}]
  %s4 = inlined_call_operand.vmem [shape: f32[128,64], index: 4, kind: output, shape index: {}]
  %s5 = sld [smem:[#allocation0]]
  $region26: #{tpu_custom_call.1} parent=0
    _
  %s7 = ssub.s32 1, %s5
  %s8 = scalar_select 0, %s7, %s5
  // Predicated region
  $region2: #{tpu_custom_call.1} parent=0 // pred_check
    _
  $region3: #{tpu_custom_call.1} parent=0 // pred_check_branch
    %10 = sbr.rel (0) target = $region5
  $region4: #{tpu_custom_call.1} parent=0 // pred_region
    _
  $region5: #{tpu_custom_call.1} parent=0 // pred_fallthru
    _
  // Predicated region
  $region6: #{tpu_custom_call.1} parent=0 // pred_check
    _
  $region7: #{tpu_custom_call.1} parent=0 // pred_check_branch
    %12 = sbr.rel (0) target = $region9
  $region8: #{tpu_custom_call.1} parent=0 // pred_region
    _
  $region9: #{tpu_custom_call.1} parent=0 // pred_fallthru
    _
  // Predicated region
  $region10: #{tpu_custom_call.1} parent=0 // pred_check
    _
  $region11: #{tpu_custom_call.1} parent=0 // pred_check_branch
    %14 = sbr.rel (0) target = $region13
  $region12: #{tpu_custom_call.1} parent=0 // pred_region
    _
  $region13: #{tpu_custom_call.1} parent=0 // pred_fallthru
    _
  // Predicated region
  $region14: #{tpu_custom_call.1} parent=0 // pred_check
    _
  $region15: #{tpu_custom_call.1} parent=0 // pred_check_branch
    %16 = sbr.rel (0) target = $region17
  $region16: #{tpu_custom_call.1} parent=0 // pred_region
    _
  $region17: #{tpu_custom_call.1} parent=0 // pred_fallthru
    _
  %v17 = vld [vmem:[%s1] sm:$0x1]
  %v18 = vld [vmem:[%s3] sm:$0x1]
  %v19 = vmul.f32 %v17, %v18
  %v20 = vld [vmem:[%s2] sm:$0x1]
  %v21 = vmul.f32 %v19, %v20
  %22 = vst [vmem:[#allocation2] sm:$0x1] %v21
  %v23 = vld [vmem:[%s2 + $0x1] sm:$0x1]
  %v24 = vmul.f32 %v19, %v23
  %25 = vst [vmem:[#allocation2 + $0x1] sm:$0x1] %v24
  %v26 = vld [vmem:[%s2 + $0x2] sm:$0x1]
  %v27 = vmul.f32 %v19, %v26
  %28 = vst [vmem:[#allocation2 + $0x2] sm:$0x1] %v27
  %v29 = vld [vmem:[%s2 + $0x3] sm:$0x1]
  %v30 = vmul.f32 %v19, %v29
  %31 = vst [vmem:[#allocation2 + $0x3] sm:$0x1] %v30
  %v32 = vld [vmem:[%s1 + $0x1] sm:$0x1]
  %v33 = vld [vmem:[%s3 + $0x1] sm:$0x1]
  %v34 = vmul.f32 %v32, %v33
  %v35 = vld [vmem:[%s2 + $0x4] sm:$0x1]
  %v36 = vmul.f32 %v34, %v35
  %37 = vst [vmem:[#allocation2 + $0x4] sm:$0x1] %v36
  %v38 = vld [vmem:[%s2 + $0x5] sm:$0x1]
  %v39 = vmul.f32 %v34, %v38
  %40 = vst [vmem:[#allocation2 + $0x5] sm:$0x1] %v39
  %v41 = vld [vmem:[%s2 + $0x6] sm:$0x1]
  %v42 = vmul.f32 %v34, %v41
  %43 = vst [vmem:[#allocation2 + $0x6] sm:$0x1] %v42
  %v44 = vld [vmem:[%s2 + $0x7] sm:$0x1]
  %v45 = vmul.f32 %v34, %v44
  %46 = vst [vmem:[#allocation2 + $0x7] sm:$0x1] %v45
  %v47 = vld [vmem:[%s1 + $0x2] sm:$0x1]
  %v48 = vld [vmem:[%s3 + $0x1] sm:$0x1]
  %v49 = vmul.f32 %v47, %v48
  %v50 = vld [vmem:[%s2 + $0x4] sm:$0x1]
  %v51 = vmul.f32 %v49, %v50
  %52 = vst [vmem:[#allocation2 + $0x8] sm:$0x1] %v51
  %v53 = vld [vmem:[%s2 + $0x5] sm:$0x1]
  %v54 = vmul.f32 %v49, %v53
  %55 = vst [vmem:[#allocation2 + $0x9] sm:$0x1] %v54
  %v56 = vld [vmem:[%s2 + $0x6] sm:$0x1]
  %v57 = vmul.f32 %v49, %v56
  %58 = vst [vmem:[#allocation2 + $0xa] sm:$0x1] %v57
  %v59 = vld [vmem:[%s2 + $0x7] sm:$0x1]
  %v60 = vmul.f32 %v49, %v59
  %61 = vst [vmem:[#allocation2 + $0xb] sm:$0x1] %v60
  %v62 = vld [vmem:[%s1 + $0x3] sm:$0x1]
  %v63 = vld [vmem:[%s3 + $0x1] sm:$0x1]
  %v64 = vmul.f32 %v62, %v63
  %v65 = vld [vmem:[%s2 + $0x4] sm:$0x1]
  %v66 = vmul.f32 %v64, %v65
  %67 = vst [vmem:[#allocation2 + $0xc] sm:$0x1] %v66
  %v68 = vld [vmem:[%s2 + $0x5] sm:$0x1]
  %v69 = vmul.f32 %v64, %v68
  %70 = vst [vmem:[#allocation2 + $0xd] sm:$0x1] %v69
  %v71 = vld [vmem:[%s2 + $0x6] sm:$0x1]
  %v72 = vmul.f32 %v64, %v71
  %73 = vst [vmem:[#allocation2 + $0xe] sm:$0x1] %v72
  %v74 = vld [vmem:[%s2 + $0x7] sm:$0x1]
  %v75 = vmul.f32 %v64, %v74
  %76 = vst [vmem:[#allocation2 + $0xf] sm:$0x1] %v75
  %v77 = vld [vmem:[%s1 + $0x1] sm:$0x1]
  %v78 = vld [vmem:[%s3 + $0x2] sm:$0x1]
  %v79 = vmul.f32 %v77, %v78
  %v80 = vld [vmem:[%s2 + $0x8] sm:$0x1]
  %v81 = vmul.f32 %v79, %v80
  %82 = vst [vmem:[#allocation2 + $0x10] sm:$0x1] %v81
  %v83 = vld [vmem:[%s2 + $0x9] sm:$0x1]
  %v84 = vmul.f32 %v79, %v83
  %85 = vst [vmem:[#allocation2 + $0x11] sm:$0x1] %v84
  %v86 = vld [vmem:[%s2 + $0xa] sm:$0x1]
  %v87 = vmul.f32 %v79, %v86
  %88 = vst [vmem:[#allocation2 + $0x12] sm:$0x1] %v87
  %v89 = vld [vmem:[%s2 + $0xb] sm:$0x1]
  %v90 = vmul.f32 %v79, %v89
  %91 = vst [vmem:[#allocation2 + $0x13] sm:$0x1] %v90
  %v92 = vld [vmem:[%s1 + $0x2] sm:$0x1]
  %v93 = vld [vmem:[%s3 + $0x2] sm:$0x1]
  %v94 = vmul.f32 %v92, %v93
  %v95 = vld [vmem:[%s2 + $0x8] sm:$0x1]
  %v96 = vmul.f32 %v94, %v95
  %97 = vst [vmem:[#allocation2 + $0x14] sm:$0x1] %v96
  %v98 = vld [vmem:[%s2 + $0x9] sm:$0x1]
  %v99 = vmul.f32 %v94, %v98
  %100 = vst [vmem:[#allocation2 + $0x15] sm:$0x1] %v99
  %v101 = vld [vmem:[%s2 + $0xa] sm:$0x1]
  %v102 = vmul.f32 %v94, %v101
  %103 = vst [vmem:[#allocation2 + $0x16] sm:$0x1] %v102
  %v104 = vld [vmem:[%s2 + $0xb] sm:$0x1]
  %v105 = vmul.f32 %v94, %v104
  %106 = vst [vmem:[#allocation2 + $0x17] sm:$0x1] %v105
  %v107 = vld [vmem:[%s1 + $0x3] sm:$0x1]
  %v108 = vld [vmem:[%s3 + $0x2] sm:$0x1]
  %v109 = vmul.f32 %v107, %v108
  %v110 = vld [vmem:[%s2 + $0x8] sm:$0x1]
  %v111 = vmul.f32 %v109, %v110
  %112 = vst [vmem:[#allocation2 + $0x18] sm:$0x1] %v111
  %v113 = vld [vmem:[%s2 + $0x9] sm:$0x1]
  %v114 = vmul.f32 %v109, %v113
  %115 = vst [vmem:[#allocation2 + $0x19] sm:$0x1] %v114
  %v116 = vld [vmem:[%s2 + $0xa] sm:$0x1]
  %v117 = vmul.f32 %v109, %v116
  %118 = vst [vmem:[#allocation2 + $0x1a] sm:$0x1] %v117
  %v119 = vld [vmem:[%s2 + $0xb] sm:$0x1]
  %v120 = vmul.f32 %v109, %v119
  %121 = vst [vmem:[#allocation2 + $0x1b] sm:$0x1] %v120
  %v122 = vld [vmem:[%s1] sm:$0x1]
  %v123 = vld [vmem:[%s3 + $0x3] sm:$0x1]
  %v124 = vmul.f32 %v122, %v123
  %v125 = vld [vmem:[%s2 + $0xc] sm:$0x1]
  %v126 = vmul.f32 %v124, %v125
  %127 = vst [vmem:[#allocation2 + $0x1c] sm:$0x1] %v126
  %v128 = vld [vmem:[%s2 + $0xf] sm:$0x1]
  %v129 = vmul.f32 %v124, %v128
  %130 = vst [vmem:[#allocation2 + $0x1d] sm:$0x1] %v129
  %v131 = vld [vmem:[%s2 + $0x12] sm:$0x1]
  %v132 = vmul.f32 %v124, %v131
  %133 = vst [vmem:[#allocation2 + $0x1e] sm:$0x1] %v132
  %v134 = vld [vmem:[%s2 + $0x15] sm:$0x1]
  %v135 = vmul.f32 %v124, %v134
  %136 = vst [vmem:[#allocation2 + $0x1f] sm:$0x1] %v135
  %v137 = vld [vmem:[%s1 + $0x1] sm:$0x1]
  %v138 = vld [vmem:[%s3 + $0x3] sm:$0x1]
  %v139 = vmul.f32 %v137, %v138
  %v140 = vld [vmem:[%s2 + $0xd] sm:$0x1]
  %v141 = vmul.f32 %v139, %v140
  %142 = vst [vmem:[#allocation2 + $0x20] sm:$0x1] %v141
  %v143 = vld [vmem:[%s2 + $0x10] sm:$0x1]
  %v144 = vmul.f32 %v139, %v143
  %145 = vst [vmem:[#allocation2 + $0x21] sm:$0x1] %v144
  %v146 = vld [vmem:[%s2 + $0x13] sm:$0x1]
  %v147 = vmul.f32 %v139, %v146
  %148 = vst [vmem:[#allocation2 + $0x22] sm:$0x1] %v147
  %v149 = vld [vmem:[%s2 + $0x16] sm:$0x1]
  %v150 = vmul.f32 %v139, %v149
  %151 = vst [vmem:[#allocation2 + $0x23] sm:$0x1] %v150
  %v152 = vld [vmem:[%s1 + $0x2] sm:$0x1]
  %v153 = vld [vmem:[%s3 + $0x3] sm:$0x1]
  %v154 = vmul.f32 %v152, %v153
  %v155 = vld [vmem:[%s2 + $0xd] sm:$0x1]
  %v156 = vmul.f32 %v154, %v155
  %157 = vst [vmem:[#allocation2 + $0x24] sm:$0x1] %v156
  %v158 = vld [vmem:[%s2 + $0x10] sm:$0x1]
  %v159 = vmul.f32 %v154, %v158
  %160 = vst [vmem:[#allocation2 + $0x25] sm:$0x1] %v159
  %v161 = vld [vmem:[%s2 + $0x13] sm:$0x1]
  %v162 = vmul.f32 %v154, %v161
  %163 = vst [vmem:[#allocation2 + $0x26] sm:$0x1] %v162
  %v164 = vld [vmem:[%s2 + $0x16] sm:$0x1]
  %v165 = vmul.f32 %v154, %v164
  %166 = vst [vmem:[#allocation2 + $0x27] sm:$0x1] %v165
  %v167 = vld [vmem:[%s1 + $0x3] sm:$0x1]
  %v168 = vld [vmem:[%s3 + $0x3] sm:$0x1]
  %v169 = vmul.f32 %v167, %v168
  %v170 = vld [vmem:[%s2 + $0xd] sm:$0x1]
  %v171 = vmul.f32 %v169, %v170
  %172 = vst [vmem:[#allocation2 + $0x28] sm:$0x1] %v171
  %v173 = vld [vmem:[%s2 + $0x10] sm:$0x1]
  %v174 = vmul.f32 %v169, %v173
  %175 = vst [vmem:[#allocation2 + $0x29] sm:$0x1] %v174
  %v176 = vld [vmem:[%s2 + $0x13] sm:$0x1]
  %v177 = vmul.f32 %v169, %v176
  %178 = vst [vmem:[#allocation2 + $0x2a] sm:$0x1] %v177
  %v179 = vld [vmem:[%s2 + $0x16] sm:$0x1]
  %v180 = vmul.f32 %v169, %v179
  %181 = vst [vmem:[#allocation2 + $0x2b] sm:$0x1] %v180
  %v182 = vld [vmem:[%s1 + $0x4] sm:$0x1]
  %v183 = vld [vmem:[%s3 + $0x3] sm:$0x1]
  %v184 = vmul.f32 %v182, %v183
  %v185 = vld [vmem:[%s2 + $0xe] sm:$0x1]
  %v186 = vmul.f32 %v184, %v185
  %187 = vst [vmem:[#allocation2 + $0x2c] sm:$0x1] %v186
  %v188 = vld [vmem:[%s2 + $0x11] sm:$0x1]
  %v189 = vmul.f32 %v184, %v188
  %190 = vst [vmem:[#allocation2 + $0x2d] sm:$0x1] %v189
  %v191 = vld [vmem:[%s2 + $0x14] sm:$0x1]
  %v192 = vmul.f32 %v184, %v191
  %193 = vst [vmem:[#allocation2 + $0x2e] sm:$0x1] %v192
  %v194 = vld [vmem:[%s2 + $0x17] sm:$0x1]
  %v195 = vmul.f32 %v184, %v194
  %196 = vst [vmem:[#allocation2 + $0x2f] sm:$0x1] %v195
  %v197 = vld [vmem:[%s1 + $0x5] sm:$0x1]
  %v198 = vld [vmem:[%s3 + $0x3] sm:$0x1]
  %v199 = vmul.f32 %v197, %v198
  %v200 = vld [vmem:[%s2 + $0xe] sm:$0x1]
  %v201 = vmul.f32 %v199, %v200
  %202 = vst [vmem:[#allocation2 + $0x30] sm:$0x1] %v201
  %v203 = vld [vmem:[%s2 + $0x11] sm:$0x1]
  %v204 = vmul.f32 %v199, %v203
  %205 = vst [vmem:[#allocation2 + $0x31] sm:$0x1] %v204
  %v206 = vld [vmem:[%s2 + $0x14] sm:$0x1]
  %v207 = vmul.f32 %v199, %v206
  %208 = vst [vmem:[#allocation2 + $0x32] sm:$0x1] %v207
  %v209 = vld [vmem:[%s2 + $0x17] sm:$0x1]
  %v210 = vmul.f32 %v199, %v209
  %211 = vst [vmem:[#allocation2 + $0x33] sm:$0x1] %v210
  %v212 = vld [vmem:[%s1 + $0x6] sm:$0x1]
  %v213 = vld [vmem:[%s3 + $0x3] sm:$0x1]
  %v214 = vmul.f32 %v212, %v213
  %v215 = vld [vmem:[%s2 + $0xe] sm:$0x1]
  %v216 = vmul.f32 %v214, %v215
  %217 = vst [vmem:[#allocation2 + $0x34] sm:$0x1] %v216
  %v218 = vld [vmem:[%s2 + $0x11] sm:$0x1]
  %v219 = vmul.f32 %v214, %v218
  %220 = vst [vmem:[#allocation2 + $0x35] sm:$0x1] %v219
  %v221 = vld [vmem:[%s2 + $0x14] sm:$0x1]
  %v222 = vmul.f32 %v214, %v221
  %223 = vst [vmem:[#allocation2 + $0x36] sm:$0x1] %v222
  %v224 = vld [vmem:[%s2 + $0x17] sm:$0x1]
  %v225 = vmul.f32 %v214, %v224
  %226 = vst [vmem:[#allocation2 + $0x37] sm:$0x1] %v225
  %v227 = vld [vmem:[%s1 + $0x7] sm:$0x1]
  %v228 = vld [vmem:[%s3 + $0x3] sm:$0x1]
  %v229 = vmul.f32 %v227, %v228
  %v230 = vld [vmem:[%s2 + $0xe] sm:$0x1]
  %v231 = vmul.f32 %v229, %v230
  %232 = vst [vmem:[#allocation2 + $0x38] sm:$0x1] %v231
  %v233 = vld [vmem:[%s2 + $0x11] sm:$0x1]
  %v234 = vmul.f32 %v229, %v233
  %235 = vst [vmem:[#allocation2 + $0x39] sm:$0x1] %v234
  %v236 = vld [vmem:[%s2 + $0x14] sm:$0x1]
  %v237 = vmul.f32 %v229, %v236
  %238 = vst [vmem:[#allocation2 + $0x3a] sm:$0x1] %v237
  %v239 = vld [vmem:[%s2 + $0x17] sm:$0x1]
  %v240 = vmul.f32 %v229, %v239
  %241 = vst [vmem:[#allocation2 + $0x3b] sm:$0x1] %v240
  %v242 = vld [vmem:[%s1 + $0x8] sm:$0x1]
  %v243 = vld [vmem:[%s3 + $0x3] sm:$0x1]
  %v244 = vmul.f32 %v242, %v243
  %v245 = vld [vmem:[%s2 + $0xe] sm:$0x1]
  %v246 = vmul.f32 %v244, %v245
  %247 = vst [vmem:[#allocation2 + $0x3c] sm:$0x1] %v246
  %v248 = vld [vmem:[%s2 + $0x11] sm:$0x1]
  %v249 = vmul.f32 %v244, %v248
  %250 = vst [vmem:[#allocation2 + $0x3d] sm:$0x1] %v249
  %v251 = vld [vmem:[%s2 + $0x14] sm:$0x1]
  %v252 = vmul.f32 %v244, %v251
  %253 = vst [vmem:[#allocation2 + $0x3e] sm:$0x1] %v252
  %v254 = vld [vmem:[%s2 + $0x17] sm:$0x1]
  %v255 = vmul.f32 %v244, %v254
  %256 = vst [vmem:[#allocation2 + $0x3f] sm:$0x1] %v255
  %v257 = vld [vmem:[%s0] sm:$0xff]
  %v258 = vld [vmem:[%s0 + $0x8] sm:$0xff]
  %v259 = vld [vmem:[%s0 + $0x10] sm:$0xff]
  %v260 = vld [vmem:[%s0 + $0x18] sm:$0xff]
  %v261 = vld [vmem:[%s0 + $0x20] sm:$0xff]
  %v262 = vld [vmem:[%s0 + $0x28] sm:$0xff]
  %v263 = vld [vmem:[%s0 + $0x30] sm:$0xff]
  %v264 = vld [vmem:[%s0 + $0x38] sm:$0xff]
  %v265 = vld [vmem:[%s0 + $0x40] sm:$0xff]
  %v266 = vld [vmem:[%s0 + $0x48] sm:$0xff]
  %v267 = vld [vmem:[%s0 + $0x50] sm:$0xff]
  %v268 = vld [vmem:[%s0 + $0x58] sm:$0xff]
  %v269 = vld [vmem:[%s0 + $0x60] sm:$0xff]
  %v270 = vld [vmem:[%s0 + $0x68] sm:$0xff]
  %v271 = vld [vmem:[%s0 + $0x70] sm:$0xff]
  %v272 = vld [vmem:[%s0 + $0x78] sm:$0xff]
  %v273 = vld [vmem:[#allocation2] sm:$0xff]
  %v274 = vld [vmem:[#allocation2 + $0x8] sm:$0xff]
  %v275 = vld [vmem:[#allocation2 + $0x10] sm:$0xff]
  %v276 = vld [vmem:[#allocation2 + $0x18] sm:$0xff]
  %v277 = vld [vmem:[#allocation2 + $0x20] sm:$0xff]
  %v278 = vld [vmem:[#allocation2 + $0x28] sm:$0xff]
  %v279 = vld [vmem:[#allocation2 + $0x30] sm:$0xff]
  %v280 = vld [vmem:[#allocation2 + $0x38] sm:$0xff]
  %vm281 = vcmask 523264
  %v283 = vsel %vm281, %v257, 0
  %v286 = vsel %vm281, %v258, 0
  %v289 = vsel %vm281, %v259, 0
  %v292 = vsel %vm281, %v260, 0
  %v295 = vsel %vm281, %v261, 0
  %v298 = vsel %vm281, %v262, 0
  %v301 = vsel %vm281, %v263, 0
  %v304 = vsel %vm281, %v264, 0
  %v307 = vsel %vm281, %v265, 0
  %v310 = vsel %vm281, %v266, 0
  %v313 = vsel %vm281, %v267, 0
  %v316 = vsel %vm281, %v268, 0
  %v319 = vsel %vm281, %v269, 0
  %v322 = vsel %vm281, %v270, 0
  %v325 = vsel %vm281, %v271, 0
  %v328 = vsel %vm281, %v272, 0
  %330 = vmatprep.subr.mxu0 0.0
  %331 = vmatpush1.msra.mxu0 0.0
  %332 = vmatprep.subr.mxu0 0.0
  %333 = vmatpush1.msra.mxu0 0.0
  %334 = vmatprep.subr.mxu0 0.0
  %335 = vmatpush1.msra.mxu0 0.0
  %336 = vmatprep.subr.mxu0 0.0
  %337 = vmatpush1.msra.mxu0 0.0
  %338 = vmatprep.subr.mxu0 0.0
  %339 = vmatpush1.msra.mxu0 0.0
  %340 = vmatprep.subr.mxu0 0.0
  %341 = vmatpush1.msra.mxu0 0.0
  %342 = vmatprep.subr.mxu0 0.0
  %343 = vmatpush1.msra.mxu0 0.0
  %344 = vmatprep.subr.mxu0 0.0
  %345 = vmatpush1.msra.mxu0 0.0
  %346 = vmatprep.subr.mxu0 0.0
  %347 = vmatpush1.msra.mxu0 %v280
  %348 = vmatprep.subr.mxu0 0.0
  %349 = vmatpush1.msra.mxu0 %v279
  %350 = vmatprep.subr.mxu0 0.0
  %351 = vmatpush1.msra.mxu0 %v278
  %352 = vmatprep.subr.mxu0 0.0
  %353 = vmatpush1.msra.mxu0 %v277
  %354 = vmatprep.subr.mxu0 0.0
  %355 = vmatpush1.msra.mxu0 %v276
  %356 = vmatprep.subr.mxu0 0.0
  %357 = vmatpush1.msra.mxu0 %v275
  %358 = vmatprep.subr.mxu0 0.0
  %359 = vmatpush1.msra.mxu0 %v274
  %360 = vmatprep.subr.mxu0 0.0
  %361 = vmatpush1.msra.mxu0 %v273
  %362 = vmatprep.subr.mxu0 0.0
  %363 = vmatpush2.msra.mxu0 0.0
  %364 = vmatprep.subr.mxu0 0.0
  %365 = vmatpush2.msra.mxu0 0.0
  %366 = vmatprep.subr.mxu0 0.0
  %367 = vmatpush2.msra.mxu0 0.0
  %368 = vmatprep.subr.mxu0 0.0
  %369 = vmatpush2.msra.mxu0 0.0
  %370 = vmatprep.subr.mxu0 0.0
  %371 = vmatpush2.msra.mxu0 0.0
  %372 = vmatprep.subr.mxu0 0.0
  %373 = vmatpush2.msra.mxu0 0.0
  %374 = vmatprep.subr.mxu0 0.0
  %375 = vmatpush2.msra.mxu0 0.0
  %376 = vmatprep.subr.mxu0 0.0
  %377 = vmatpush2.msra.mxu0 0.0
  %378 = vmatprep.subr.mxu0 0.0
  %379 = vmatpush2.msra.mxu0 0.0
  %380 = vmatprep.subr.mxu0 0.0
  %381 = vmatpush2.msra.mxu0 0.0
  %382 = vmatprep.subr.mxu0 0.0
  %383 = vmatpush2.msra.mxu0 0.0
  %384 = vmatprep.subr.mxu0 0.0
  %385 = vmatpush2.msra.mxu0 0.0
  %386 = vmatprep.subr.mxu0 0.0
  %387 = vmatpush2.msra.mxu0 0.0
  %388 = vmatprep.subr.mxu0 0.0
  %389 = vmatpush2.msra.mxu0 0.0
  %390 = vmatprep.subr.mxu0 0.0
  %391 = vmatpush2.msra.mxu0 0.0
  %392 = vmatprep.subr.mxu0 0.0
  %393 = vmatpush2.msra.mxu0 0.0
  %394 = vmatprep.mubr.f32.mxu0 0.0
  %395 = vmatmul.mubr.f32.gmra.mxu0 %v283
  %v396 = vpop.f32.mrf.mxu0
  %v397 = vadd.f32 0.0, %v396
  %v398 = vpop.f32.mrf.mxu0
  %399 = vmatprep.mubr.f32.mxu0 0.0
  %400 = vmatmul.mubr.f32.gmra.mxu0 %v286
  %v401 = vpop.f32.mrf.mxu0
  %v402 = vadd.f32 0.0, %v401
  %v403 = vpop.f32.mrf.mxu0
  %404 = vmatprep.mubr.f32.mxu0 0.0
  %405 = vmatmul.mubr.f32.gmra.mxu0 %v289
  %v406 = vpop.f32.mrf.mxu0
  %v407 = vadd.f32 0.0, %v406
  %v408 = vpop.f32.mrf.mxu0
  %409 = vmatprep.mubr.f32.mxu0 0.0
  %410 = vmatmul.mubr.f32.gmra.mxu0 %v292
  %v411 = vpop.f32.mrf.mxu0
  %v412 = vadd.f32 0.0, %v411
  %v413 = vpop.f32.mrf.mxu0
  %414 = vmatprep.mubr.f32.mxu0 0.0
  %415 = vmatmul.mubr.f32.gmra.mxu0 %v295
  %v416 = vpop.f32.mrf.mxu0
  %v417 = vadd.f32 0.0, %v416
  %v418 = vpop.f32.mrf.mxu0
  %419 = vmatprep.mubr.f32.mxu0 0.0
  %420 = vmatmul.mubr.f32.gmra.mxu0 %v298
  %v421 = vpop.f32.mrf.mxu0
  %v422 = vadd.f32 0.0, %v421
  %v423 = vpop.f32.mrf.mxu0
  %424 = vmatprep.mubr.f32.mxu0 0.0
  %425 = vmatmul.mubr.f32.gmra.mxu0 %v301
  %v426 = vpop.f32.mrf.mxu0
  %v427 = vadd.f32 0.0, %v426
  %v428 = vpop.f32.mrf.mxu0
  %429 = vmatprep.mubr.f32.mxu0 0.0
  %430 = vmatmul.mubr.f32.gmra.mxu0 %v304
  %v431 = vpop.f32.mrf.mxu0
  %v432 = vadd.f32 0.0, %v431
  %v433 = vpop.f32.mrf.mxu0
  %434 = vmatprep.mubr.f32.mxu0 0.0
  %435 = vmatmul.mubr.f32.gmra.mxu0 %v307
  %v436 = vpop.f32.mrf.mxu0
  %v437 = vadd.f32 0.0, %v436
  %v438 = vpop.f32.mrf.mxu0
  %439 = vmatprep.mubr.f32.mxu0 0.0
  %440 = vmatmul.mubr.f32.gmra.mxu0 %v310
  %v441 = vpop.f32.mrf.mxu0
  %v442 = vadd.f32 0.0, %v441
  %v443 = vpop.f32.mrf.mxu0
  %444 = vmatprep.mubr.f32.mxu0 0.0
  %445 = vmatmul.mubr.f32.gmra.mxu0 %v313
  %v446 = vpop.f32.mrf.mxu0
  %v447 = vadd.f32 0.0, %v446
  %v448 = vpop.f32.mrf.mxu0
  %449 = vmatprep.mubr.f32.mxu0 0.0
  %450 = vmatmul.mubr.f32.gmra.mxu0 %v316
  %v451 = vpop.f32.mrf.mxu0
  %v452 = vadd.f32 0.0, %v451
  %v453 = vpop.f32.mrf.mxu0
  %454 = vmatprep.mubr.f32.mxu0 0.0
  %455 = vmatmul.mubr.f32.gmra.mxu0 %v319
  %v456 = vpop.f32.mrf.mxu0
  %v457 = vadd.f32 0.0, %v456
  %v458 = vpop.f32.mrf.mxu0
  %459 = vmatprep.mubr.f32.mxu0 0.0
  %460 = vmatmul.mubr.f32.gmra.mxu0 %v322
  %v461 = vpop.f32.mrf.mxu0
  %v462 = vadd.f32 0.0, %v461
  %v463 = vpop.f32.mrf.mxu0
  %464 = vmatprep.mubr.f32.mxu0 0.0
  %465 = vmatmul.mubr.f32.gmra.mxu0 %v325
  %v466 = vpop.f32.mrf.mxu0
  %v467 = vadd.f32 0.0, %v466
  %v468 = vpop.f32.mrf.mxu0
  %469 = vmatprep.mubr.f32.mxu0 0.0
  %470 = vmatmul.mubr.f32.gmra.mxu0 %v328
  %v471 = vpop.f32.mrf.mxu0
  %v472 = vadd.f32 0.0, %v471
  %v473 = vpop.f32.mrf.mxu0
  %474 = vdwg.mxu0
  %475 = vxpose.xlu0.b32.start [1/16] %v397, 128
  %476 = vxpose.xlu0.b32.cont [2/16] %v402, 128
  %477 = vxpose.xlu0.b32.cont [3/16] %v407, 128
  %478 = vxpose.xlu0.b32.cont [4/16] %v412, 128
  %479 = vxpose.xlu0.b32.cont [5/16] %v417, 128
  %480 = vxpose.xlu0.b32.cont [6/16] %v422, 128
  %481 = vxpose.xlu0.b32.cont [7/16] %v427, 128
  %482 = vxpose.xlu0.b32.cont [8/16] %v432, 128
  %483 = vxpose.xlu0.b32.cont [9/16] %v437, 128
  %484 = vxpose.xlu0.b32.cont [10/16] %v442, 128
  %485 = vxpose.xlu0.b32.cont [11/16] %v447, 128
  %486 = vxpose.xlu0.b32.cont [12/16] %v452, 128
  %487 = vxpose.xlu0.b32.cont [13/16] %v457, 128
  %488 = vxpose.xlu0.b32.cont [14/16] %v462, 128
  %489 = vxpose.xlu0.b32.cont [15/16] %v467, 128
  %490 = vxpose.xlu0.b32.end [16/16] %v472, 128
  %v491 = vpop.trf.xlu0
  %v492 = vpop.trf.xlu0
  %v493 = vpop.trf.xlu0
  %v494 = vpop.trf.xlu0
  %v495 = vpop.trf.xlu0
  %v496 = vpop.trf.xlu0
  %v497 = vpop.trf.xlu0
  %v498 = vpop.trf.xlu0
  %v499 = vpop.trf.xlu0
  %v500 = vpop.trf.xlu0
  %v501 = vpop.trf.xlu0
  %v502 = vpop.trf.xlu0
  %v503 = vpop.trf.xlu0
  %v504 = vpop.trf.xlu0
  %v505 = vpop.trf.xlu0
  %v506 = vpop.trf.xlu0
  %507 = vst.msk [vmem:[%s4] sm:$0xff] %vm281, %v491
  %508 = vst.msk [vmem:[%s4 + $0x8] sm:$0xff] %vm281, %v492
  %509 = vst.msk [vmem:[%s4 + $0x10] sm:$0xff] %vm281, %v493
  %510 = vst.msk [vmem:[%s4 + $0x18] sm:$0xff] %vm281, %v494
  %511 = vst.msk [vmem:[%s4 + $0x20] sm:$0xff] %vm281, %v495
  %512 = vst.msk [vmem:[%s4 + $0x28] sm:$0xff] %vm281, %v496
  %513 = vst.msk [vmem:[%s4 + $0x30] sm:$0xff] %vm281, %v497
  %514 = vst.msk [vmem:[%s4 + $0x38] sm:$0xff] %vm281, %v498
  %515 = vst.msk [vmem:[%s4 + $0x40] sm:$0xff] %vm281, %v499
  %516 = vst.msk [vmem:[%s4 + $0x48] sm:$0xff] %vm281, %v500
  %517 = vst.msk [vmem:[%s4 + $0x50] sm:$0xff] %vm281, %v501
  %518 = vst.msk [vmem:[%s4 + $0x58] sm:$0xff] %vm281, %v502
  %519 = vst.msk [vmem:[%s4 + $0x60] sm:$0xff] %vm281, %v503
  %520 = vst.msk [vmem:[%s4 + $0x68] sm:$0xff] %vm281, %v504
  %521 = vst.msk [vmem:[%s4 + $0x70] sm:$0xff] %vm281, %v505
  %522 = vst.msk [vmem:[%s4 + $0x78] sm:$0xff] %vm281, %v506
  // Predicated region
  $region18: #{tpu_custom_call.1} parent=0 // pred_check
    _
  $region19: #{tpu_custom_call.1} parent=0 // pred_check_branch
    %524 = sbr.rel (0) target = $region21
  $region20: #{tpu_custom_call.1} parent=0 // pred_region
    _
  $region21: #{tpu_custom_call.1} parent=0 // pred_fallthru
    _
  // Predicated region
  $region22: #{tpu_custom_call.1} parent=0 // pred_check
    _
  $region23: #{tpu_custom_call.1} parent=0 // pred_check_branch
    %526 = sbr.rel (0) target = $region25
  $region24: #{tpu_custom_call.1} parent=0 // pred_region
    _
  $region25: #{tpu_custom_call.1} parent=0 // pred_fallthru
    _

</llo_original>
